<compile_context>
chip_gen: v7x
topology: tpu7x:2x2x1
jax: 0.10.0
libtpu: 0.0.40
codegen_flags: <defaults>
</compile_context>

<pallas_src>
import functools

import jax
import jax.numpy as jnp
from jax.experimental import pallas as pl
from jax.experimental.pallas import tpu as pltpu

LANE = 128


def _round_up(n, m=LANE):
    return ((n + m - 1) // m) * m


def _vmem_limit_bytes():
    # ~3/4 of physical VMEM: ~96 MiB on v5e/v6e (128 MiB/TC), ~48 MiB on v7x (64 MiB/TC).
    try:
        cap = int(pltpu.get_tpu_info().vmem_capacity_bytes)
    except Exception:
        cap = 64 * 1024 * 1024            # conservative fallback (v7x-sized VMEM)
    return min((cap * 3) // 4, 100 * 1024 * 1024)


def _bytes_per_row(c_max, K):
    # Conservative per-timestep VMEM estimate of the in-kernel intermediates:
    # f32 carried x, f32 z1 (incl. downsample columns), f32 h, f32 branch,
    # two bf16 packed tap operands, double-buffered bf16 in/out blocks.
    return c_max * (4 + 8 + 4 + 4 + 2 * (2 * K) + 2 * 2 * 2)


def _pick_batch_tile(B, L, bytes_per_row, vmem_budget_bytes):
    """Largest affordable batch tile; prefer >=256 MXU rows and >=2 grid steps."""
    rows_cap = max(L, vmem_budget_bytes // max(bytes_per_row, 1))
    divisors = [d for d in range(1, B + 1) if B % d == 0]
    cands = [d for d in divisors
             if d * L <= rows_cap and (B // d >= 2 or B == 1)]
    if not cands:
        cands = [1]
    for d in cands:                       # smallest tile that already fills >=256 rows
        if d * L >= 256:
            return d
    return cands[-1]                      # otherwise the biggest affordable tile


# ----------------------------------------------------------------------------
# Fused full-network kernel (Bt batch elements per grid step, all layers)
# ----------------------------------------------------------------------------
def _tcn_fused_kernel(x_ref, *refs, K, dilations, c_mid_ps, has_ds, L, Bt):
    """x_ref : (Bt, L, Cin_p)  bf16, lane-padded, channels-last
       refs  : per layer (w1, b1, w2, b2), then the output ref.
               w1: (K*Cin_p, Cmid_p [+ Cout_p]) bf16  (downsample 1x1 folded into
                   the shift-0 tap rows of the extra Cout_p columns)
               b1: (1, Cmid_p [+ Cout_p]) f32
               w2: (K*Cmid_p, Cout_p) bf16 ; b2: (1, Cout_p) f32
       o_ref : (Bt, L, Cout_p) bf16
    """
    o_ref = refs[-1]
    params = refs[:-1]
    M = Bt * L

    # Flatten (Bt, L, C) -> (Bt*L, C): big MXU M dimension, one dot per conv.
    x = x_ref[...].reshape(M, x_ref.shape[-1]).astype(jnp.float32)

    # Time index of each flattened row within its own sequence (causal mask).
    t_row = jax.lax.broadcasted_iota(jnp.int32, (M, 1), 0) % L

    def causal_taps_bf16(v, d):
        # tap k multiplies x[t - (K-1-k)*d]; rows with t < shift are zero
        # (== Conv1d(padding=(K-1)*d) + Chomp1d).  pltpu.roll is a sublane
        # rotate (XLU slot) and the iota mask is VPU work — free filler under
        # the MXU.  Rolling the flattened (Bt*L, C) array is safe: every
        # cross-sequence row the roll drags in lands on a masked t < shift row.
        cols = []
        for k in range(K):
            s = (K - 1 - k) * d
            if s == 0:
                cols.append(v)
            elif s >= L:
                cols.append(jnp.zeros_like(v))
            else:
                rolled = pltpu.roll(v, shift=s, axis=0)
                cols.append(jnp.where(t_row >= s, rolled, 0.0))
        packed = cols[0] if K == 1 else jnp.concatenate(cols, axis=-1)
        return packed.astype(jnp.bfloat16)     # bf16 operands, f32 accumulation

    for li, d in enumerate(dilations):
        w1, b1, w2, b2 = params[4 * li:4 * li + 4]
        c_mid = c_mid_ps[li]

        # conv1 -> chomp -> relu (+ folded 1x1 downsample output columns)
        z1 = jnp.dot(causal_taps_bf16(x, d), w1[...],
                     preferred_element_type=jnp.float32) + b1[...]
        if has_ds[li]:
            h = jnp.maximum(z1[:, :c_mid], 0.0)
            res = z1[:, c_mid:]                    # downsample(x) + bias, f32
        else:
            h = jnp.maximum(z1, 0.0)
            res = x                                # identity residual kept in f32

        # conv2 -> chomp -> relu
        branch = jnp.dot(causal_taps_bf16(h, d), w2[...],
                         preferred_element_type=jnp.float32) + b2[...]
        branch = jnp.maximum(branch, 0.0)

        # residual add + final relu (dropout = identity in eval mode)
        x = jnp.maximum(branch + res, 0.0)

    o_ref[...] = x.reshape(Bt, L, x.shape[-1]).astype(o_ref.dtype)


# ----------------------------------------------------------------------------
# Parameter init (deterministic) + host-side packing (weight-norm fold,
# lane padding, tap flattening, downsample stacking, bf16 cast)
# ----------------------------------------------------------------------------
def _weight_norm_weight(key, K, cin, cout):
    """W = g * v / ||v|| with per-output-channel norm over (K, cin)."""
    v = 0.01 * jax.random.normal(key, (K, cin, cout), jnp.float32)
    norm = jnp.sqrt(jnp.sum(v * v, axis=(0, 1), keepdims=True))
    g = norm
    return g * v / norm


def _conv_bias(key, fan_in, cout):
    bound = 1.0 / jnp.sqrt(jnp.float32(fan_in))
    return jax.random.uniform(key, (1, cout), jnp.float32, -bound, bound)


def init_tcn_params(key, num_inputs, num_channels, kernel_size):
    raw = []
    for i, cout in enumerate(num_channels):
        cin = num_inputs if i == 0 else num_channels[i - 1]
        key, k1, k2, k3, k4, k5, k6 = jax.random.split(key, 7)
        raw.append({
            "w1": _weight_norm_weight(k1, kernel_size, cin, cout),
            "b1": _conv_bias(k2, cin * kernel_size, cout),
            "w2": _weight_norm_weight(k3, kernel_size, cout, cout),
            "b2": _conv_bias(k4, cout * kernel_size, cout),
            "wd": (0.01 * jax.random.normal(k5, (cin, cout), jnp.float32)
                   if cin != cout else None),
            "bd": (_conv_bias(k6, cin, cout) if cin != cout else None),
        })
    return raw


def prepare_tcn_params(raw, num_inputs, num_channels, kernel_size):
    """Zero-pad channels to 128-lane multiples, flatten the K taps into matmul
    weights, stack the 1x1 downsample into conv1's extra output columns, and
    ship weights as bf16 (biases stay f32; all accumulation is f32)."""
    K = kernel_size
    blocks = []
    for i, p in enumerate(raw):
        cin = num_inputs if i == 0 else num_channels[i - 1]
        cout = num_channels[i]
        cin_p, cout_p = _round_up(cin), _round_up(cout)
        cmid_p = cout_p

        w1 = jnp.zeros((K, cin_p, cmid_p), jnp.float32
                       ).at[:, :cin, :cout].set(p["w1"])
        b1 = jnp.zeros((1, cmid_p), jnp.float32).at[:, :cout].set(p["b1"])
        w2 = jnp.zeros((K, cmid_p, cout_p), jnp.float32
                       ).at[:, :cout, :cout].set(p["w2"])
        b2 = jnp.zeros((1, cout_p), jnp.float32).at[:, :cout].set(p["b2"])
        w1_flat = w1.reshape(K * cin_p, cmid_p)
        w2_flat = w2.reshape(K * cmid_p, cout_p)

        if p["wd"] is not None:
            wd = jnp.zeros((cin_p, cout_p), jnp.float32
                           ).at[:cin, :cout].set(p["wd"])
            bd = jnp.zeros((1, cout_p), jnp.float32).at[:, :cout].set(p["bd"])
            # the shift-0 tap (k = K-1, current x) feeds the residual columns
            wd_rows = jnp.zeros((K * cin_p, cout_p), jnp.float32
                                ).at[(K - 1) * cin_p:, :].set(wd)
            w1_flat = jnp.concatenate([w1_flat, wd_rows], axis=1)
            b1 = jnp.concatenate([b1, bd], axis=1)

        blocks.append({"w1": w1_flat.astype(jnp.bfloat16), "b1": b1,
                       "w2": w2_flat.astype(jnp.bfloat16), "b2": b2})
    return blocks


# ----------------------------------------------------------------------------
# Forward
# ----------------------------------------------------------------------------
def temporal_conv_net(x_ncl, blocks, *, kernel_size, c_out):
    """x_ncl: (B, Cin, L) like PyTorch NCL -> (B, c_out, L) float32."""
    B, c_in, L = x_ncl.shape
    cin_p = _round_up(c_in)
    K = kernel_size

    # Static per-layer config derived from the packed weight shapes.
    dilations, c_mid_ps, has_ds, flat_params = [], [], [], []
    for i, blk in enumerate(blocks):
        c_mid = blk["w2"].shape[0] // K
        dilations.append(2 ** i)
        c_mid_ps.append(c_mid)
        has_ds.append(blk["w1"].shape[1] != c_mid)
        flat_params += [blk["w1"], blk["b1"], blk["w2"], blk["b2"]]
    cout_p = blocks[-1]["w2"].shape[1]

    vmem_limit = _vmem_limit_bytes()
    c_max = max([cin_p, cout_p] + c_mid_ps)
    Bt = _pick_batch_tile(B, L, _bytes_per_row(c_max, K), vmem_limit // 2)

    # One-time NCL -> channels-last, 128-lane zero pad, bf16 (single XLA copy);
    # everything downstream stays lane-dense / channels-last in VMEM.
    x = jnp.transpose(x_ncl, (0, 2, 1))
    x = jnp.pad(x, ((0, 0), (0, 0), (0, cin_p - c_in))).astype(jnp.bfloat16)

    kernel = functools.partial(
        _tcn_fused_kernel, K=K, dilations=tuple(dilations),
        c_mid_ps=tuple(c_mid_ps), has_ds=tuple(has_ds), L=L, Bt=Bt)

    in_specs = [pl.BlockSpec((Bt, L, cin_p), lambda i: (i, 0, 0))]
    for pmat in flat_params:
        # Full-array weight/bias blocks: fetched once, resident across the grid.
        in_specs.append(pl.BlockSpec(pmat.shape, lambda i: (0, 0)))

    out = pl.pallas_call(
        kernel,
        out_shape=jax.ShapeDtypeStruct((B, L, cout_p), jnp.bfloat16),
        grid=(B // Bt,),
        in_specs=in_specs,
        out_specs=pl.BlockSpec((Bt, L, cout_p), lambda i: (i, 0, 0)),
        compiler_params=pltpu.CompilerParams(
            dimension_semantics=("parallel",),   # TODO(synk): try CORE_PARALLEL on v7x
            vmem_limit_bytes=vmem_limit),
    )(x, *flat_params)

    return jnp.transpose(out[:, :, :c_out], (0, 2, 1)).astype(jnp.float32)


# ----------------------------------------------------------------------------
if __name__ == "__main__":
    key = jax.random.PRNGKey(0)
    k_x, k_p = jax.random.split(key)

    # Small shapes consistent with the module: batch=2, num_inputs=4, length=16
    B, C_IN, L = 2, 4, 16
    NUM_CHANNELS = [8, 8, 16]
    KERNEL_SIZE = 2

    x = jax.random.normal(k_x, (B, C_IN, L), jnp.float32)    # NCL, like PyTorch
    raw = init_tcn_params(k_p, C_IN, NUM_CHANNELS, KERNEL_SIZE)
    blocks = prepare_tcn_params(raw, C_IN, NUM_CHANNELS, KERNEL_SIZE)

    fwd = jax.jit(functools.partial(temporal_conv_net,
                                    kernel_size=KERNEL_SIZE,
                                    c_out=NUM_CHANNELS[-1]))
    out = jax.block_until_ready(fwd(x, blocks))

    assert out.shape == (B, NUM_CHANNELS[-1], L), out.shape
    assert bool(jnp.all(jnp.isfinite(out)))
    assert bool(jnp.all(out >= 0.0))      # final op is a ReLU
    print("KERNEL_OK")
</pallas_src>

<mosaic_0001>
module attributes {stable_mosaic.version = 11 : i64} {
  func.func @_tcn_fused_kernel(%arg0: i32, %arg1: memref<1x16x128xbf16, #tpu.memory_space<vmem>>, %arg2: memref<256x256xbf16, #tpu.memory_space<vmem>>, %arg3: memref<1x256xf32, #tpu.memory_space<vmem>>, %arg4: memref<256x128xbf16, #tpu.memory_space<vmem>>, %arg5: memref<1x128xf32, #tpu.memory_space<vmem>>, %arg6: memref<256x128xbf16, #tpu.memory_space<vmem>>, %arg7: memref<1x128xf32, #tpu.memory_space<vmem>>, %arg8: memref<256x128xbf16, #tpu.memory_space<vmem>>, %arg9: memref<1x128xf32, #tpu.memory_space<vmem>>, %arg10: memref<256x256xbf16, #tpu.memory_space<vmem>>, %arg11: memref<1x256xf32, #tpu.memory_space<vmem>>, %arg12: memref<256x128xbf16, #tpu.memory_space<vmem>>, %arg13: memref<1x128xf32, #tpu.memory_space<vmem>>, %arg14: memref<1x16x128xbf16, #tpu.memory_space<vmem>>) attributes {dimension_semantics = [#tpu.dimension_semantics<parallel>], iteration_bounds = array<i64: 2>, scalar_prefetch = 0 : i64, scratch_operands = 0 : i64, tpu.core_type = #tpu.core_type<tc>, window_params = [{transform_indices = @transform_0, window_bounds = array<i64: 1, 16, 128>}, {pipeline_mode = #tpu.pipeline_mode<synchronous>, transform_indices = @transform_1, window_bounds = array<i64: 256, 256>}, {pipeline_mode = #tpu.pipeline_mode<synchronous>, transform_indices = @transform_2, window_bounds = array<i64: 1, 256>}, {pipeline_mode = #tpu.pipeline_mode<synchronous>, transform_indices = @transform_3, window_bounds = array<i64: 256, 128>}, {pipeline_mode = #tpu.pipeline_mode<synchronous>, transform_indices = @transform_4, window_bounds = array<i64: 1, 128>}, {pipeline_mode = #tpu.pipeline_mode<synchronous>, transform_indices = @transform_5, window_bounds = array<i64: 256, 128>}, {pipeline_mode = #tpu.pipeline_mode<synchronous>, transform_indices = @transform_6, window_bounds = array<i64: 1, 128>}, {pipeline_mode = #tpu.pipeline_mode<synchronous>, transform_indices = @transform_7, window_bounds = array<i64: 256, 128>}, {pipeline_mode = #tpu.pipeline_mode<synchronous>, transform_indices = @transform_8, window_bounds = array<i64: 1, 128>}, {pipeline_mode = #tpu.pipeline_mode<synchronous>, transform_indices = @transform_9, window_bounds = array<i64: 256, 256>}, {pipeline_mode = #tpu.pipeline_mode<synchronous>, transform_indices = @transform_10, window_bounds = array<i64: 1, 256>}, {pipeline_mode = #tpu.pipeline_mode<synchronous>, transform_indices = @transform_11, window_bounds = array<i64: 256, 128>}, {pipeline_mode = #tpu.pipeline_mode<synchronous>, transform_indices = @transform_12, window_bounds = array<i64: 1, 128>}, {transform_indices = @transform_13, window_bounds = array<i64: 1, 16, 128>}]} {
    %c0 = arith.constant 0 : index
    %c0_0 = arith.constant 0 : index
    %c0_1 = arith.constant 0 : index
    %0 = vector.load %arg1[%c0, %c0_0, %c0_1] : memref<1x16x128xbf16, #tpu.memory_space<vmem>>, vector<1x16x128xbf16>
    %1 = vector.shape_cast %0 : vector<1x16x128xbf16> to vector<16x128xbf16>
    %2 = arith.extf %1 : vector<16x128xbf16> to vector<16x128xf32>
    %3 = tpu.iota {dimensions = array<i32: 0>} : vector<16x1xi32>
    %c16_i32 = arith.constant 16 : i32
    %c0_i32 = arith.constant 0 : i32
    %4 = arith.cmpi eq, %c16_i32, %c0_i32 : i32
    %c1_i32 = arith.constant 1 : i32
    %5 = arith.select %4, %c1_i32, %c16_i32 : i32
    %6 = vector.broadcast %5 : i32 to vector<16x1xi32>
    %7 = arith.remsi %3, %6 : vector<16x1xi32>
    %c0_i32_2 = arith.constant 0 : i32
    %8 = vector.broadcast %c0_i32_2 : i32 to vector<16x1xi32>
    %9 = arith.cmpi ne, %7, %8 : vector<16x1xi32>
    %c0_i32_3 = arith.constant 0 : i32
    %10 = vector.broadcast %c0_i32_3 : i32 to vector<16x1xi32>
    %11 = arith.cmpi slt, %7, %10 : vector<16x1xi32>
    %c0_i32_4 = arith.constant 0 : i32
    %12 = arith.cmpi slt, %5, %c0_i32_4 : i32
    %13 = vector.broadcast %12 : i1 to vector<16x1xi1>
    %14 = vector.broadcast %13 : vector<16x1xi1> to vector<16x1xi1>
    %15 = arith.xori %11, %14 : vector<16x1xi1>
    %16 = arith.andi %15, %9 : vector<16x1xi1>
    %17 = vector.broadcast %5 : i32 to vector<16x1xi32>
    %18 = arith.addi %7, %17 : vector<16x1xi32>
    %19 = arith.select %16, %18, %7 : vector<16x1xi1>, vector<16x1xi32>
    %c1_i32_5 = arith.constant 1 : i32
    %20 = tpu.dynamic_rotate %2 by %c1_i32_5 dim 0 : vector<16x128xf32>, i32 -> vector<16x128xf32>
    %c1_i32_6 = arith.constant 1 : i32
    %21 = vector.broadcast %c1_i32_6 : i32 to vector<16x1xi32>
    %22 = arith.cmpi sge, %19, %21 : vector<16x1xi32>
    %cst = arith.constant 0.000000e+00 : f32
    %23 = vector.shape_cast %22 : vector<16x1xi1> to vector<16x1xi1>
    %24 = vector.broadcast %23 : vector<16x1xi1> to vector<16x128xi1>
    %25 = vector.broadcast %cst : f32 to vector<16x128xf32>
    %26 = arith.select %24, %20, %25 : vector<16x128xi1>, vector<16x128xf32>
    %27 = tpu.concatenate %26, %2 in 1 : vector<16x128xf32>, vector<16x128xf32> -> vector<16x256xf32>
    %28 = arith.truncf %27 : vector<16x256xf32> to vector<16x256xbf16>
    %c0_7 = arith.constant 0 : index
    %c0_8 = arith.constant 0 : index
    %29 = vector.load %arg2[%c0_7, %c0_8] : memref<256x256xbf16, #tpu.memory_space<vmem>>, vector<256x256xbf16>
    %cst_9 = arith.constant dense<0.000000e+00> : vector<16x256xf32>
    %30 = tpu.matmul %28, %29, %cst_9 {dimension_numbers = #tpu.dot_dimension_numbers<[1], [0], [0], [1], [0, 0, 1, 1], [], []>} : vector<16x256xbf16>, vector<256x256xbf16>, vector<16x256xf32> -> vector<16x256xf32>
    %c0_10 = arith.constant 0 : index
    %c0_11 = arith.constant 0 : index
    %31 = vector.load %arg3[%c0_10, %c0_11] : memref<1x256xf32, #tpu.memory_space<vmem>>, vector<1x256xf32>
    %32 = vector.broadcast %31 : vector<1x256xf32> to vector<16x256xf32>
    %33 = arith.addf %30, %32 : vector<16x256xf32>
    %34 = vector.extract_strided_slice %33 {offsets = [0, 0], sizes = [16, 128], strides = [1, 1]} : vector<16x256xf32> to vector<16x128xf32>
    %cst_12 = arith.constant 0.000000e+00 : f32
    %35 = vector.broadcast %cst_12 : f32 to vector<16x128xf32>
    %36 = arith.maximumf %34, %35 : vector<16x128xf32>
    %37 = vector.extract_strided_slice %33 {offsets = [0, 128], sizes = [16, 128], strides = [1, 1]} : vector<16x256xf32> to vector<16x128xf32>
    %c1_i32_13 = arith.constant 1 : i32
    %38 = tpu.dynamic_rotate %36 by %c1_i32_13 dim 0 : vector<16x128xf32>, i32 -> vector<16x128xf32>
    %c1_i32_14 = arith.constant 1 : i32
    %39 = vector.broadcast %c1_i32_14 : i32 to vector<16x1xi32>
    %40 = arith.cmpi sge, %19, %39 : vector<16x1xi32>
    %cst_15 = arith.constant 0.000000e+00 : f32
    %41 = vector.shape_cast %40 : vector<16x1xi1> to vector<16x1xi1>
    %42 = vector.broadcast %41 : vector<16x1xi1> to vector<16x128xi1>
    %43 = vector.broadcast %cst_15 : f32 to vector<16x128xf32>
    %44 = arith.select %42, %38, %43 : vector<16x128xi1>, vector<16x128xf32>
    %45 = tpu.concatenate %44, %36 in 1 : vector<16x128xf32>, vector<16x128xf32> -> vector<16x256xf32>
    %46 = arith.truncf %45 : vector<16x256xf32> to vector<16x256xbf16>
    %c0_16 = arith.constant 0 : index
    %c0_17 = arith.constant 0 : index
    %47 = vector.load %arg4[%c0_16, %c0_17] : memref<256x128xbf16, #tpu.memory_space<vmem>>, vector<256x128xbf16>
    %cst_18 = arith.constant dense<0.000000e+00> : vector<16x128xf32>
    %48 = tpu.matmul %46, %47, %cst_18 {dimension_numbers = #tpu.dot_dimension_numbers<[1], [0], [0], [1], [0, 0, 1, 1], [], []>} : vector<16x256xbf16>, vector<256x128xbf16>, vector<16x128xf32> -> vector<16x128xf32>
    %c0_19 = arith.constant 0 : index
    %c0_20 = arith.constant 0 : index
    %49 = vector.load %arg5[%c0_19, %c0_20] : memref<1x128xf32, #tpu.memory_space<vmem>>, vector<1x128xf32>
    %50 = vector.broadcast %49 : vector<1x128xf32> to vector<16x128xf32>
    %51 = arith.addf %48, %50 : vector<16x128xf32>
    %cst_21 = arith.constant 0.000000e+00 : f32
    %52 = vector.broadcast %cst_21 : f32 to vector<16x128xf32>
    %53 = arith.maximumf %51, %52 : vector<16x128xf32>
    %54 = arith.addf %53, %37 : vector<16x128xf32>
    %cst_22 = arith.constant 0.000000e+00 : f32
    %55 = vector.broadcast %cst_22 : f32 to vector<16x128xf32>
    %56 = arith.maximumf %54, %55 : vector<16x128xf32>
    %c2_i32 = arith.constant 2 : i32
    %57 = tpu.dynamic_rotate %56 by %c2_i32 dim 0 : vector<16x128xf32>, i32 -> vector<16x128xf32>
    %c2_i32_23 = arith.constant 2 : i32
    %58 = vector.broadcast %c2_i32_23 : i32 to vector<16x1xi32>
    %59 = arith.cmpi sge, %19, %58 : vector<16x1xi32>
    %cst_24 = arith.constant 0.000000e+00 : f32
    %60 = vector.shape_cast %59 : vector<16x1xi1> to vector<16x1xi1>
    %61 = vector.broadcast %60 : vector<16x1xi1> to vector<16x128xi1>
    %62 = vector.broadcast %cst_24 : f32 to vector<16x128xf32>
    %63 = arith.select %61, %57, %62 : vector<16x128xi1>, vector<16x128xf32>
    %64 = tpu.concatenate %63, %56 in 1 : vector<16x128xf32>, vector<16x128xf32> -> vector<16x256xf32>
    %65 = arith.truncf %64 : vector<16x256xf32> to vector<16x256xbf16>
    %c0_25 = arith.constant 0 : index
    %c0_26 = arith.constant 0 : index
    %66 = vector.load %arg6[%c0_25, %c0_26] : memref<256x128xbf16, #tpu.memory_space<vmem>>, vector<256x128xbf16>
    %cst_27 = arith.constant dense<0.000000e+00> : vector<16x128xf32>
    %67 = tpu.matmul %65, %66, %cst_27 {dimension_numbers = #tpu.dot_dimension_numbers<[1], [0], [0], [1], [0, 0, 1, 1], [], []>} : vector<16x256xbf16>, vector<256x128xbf16>, vector<16x128xf32> -> vector<16x128xf32>
    %c0_28 = arith.constant 0 : index
    %c0_29 = arith.constant 0 : index
    %68 = vector.load %arg7[%c0_28, %c0_29] : memref<1x128xf32, #tpu.memory_space<vmem>>, vector<1x128xf32>
    %69 = vector.broadcast %68 : vector<1x128xf32> to vector<16x128xf32>
    %70 = arith.addf %67, %69 : vector<16x128xf32>
    %cst_30 = arith.constant 0.000000e+00 : f32
    %71 = vector.broadcast %cst_30 : f32 to vector<16x128xf32>
    %72 = arith.maximumf %70, %71 : vector<16x128xf32>
    %c2_i32_31 = arith.constant 2 : i32
    %73 = tpu.dynamic_rotate %72 by %c2_i32_31 dim 0 : vector<16x128xf32>, i32 -> vector<16x128xf32>
    %c2_i32_32 = arith.constant 2 : i32
    %74 = vector.broadcast %c2_i32_32 : i32 to vector<16x1xi32>
    %75 = arith.cmpi sge, %19, %74 : vector<16x1xi32>
    %cst_33 = arith.constant 0.000000e+00 : f32
    %76 = vector.shape_cast %75 : vector<16x1xi1> to vector<16x1xi1>
    %77 = vector.broadcast %76 : vector<16x1xi1> to vector<16x128xi1>
    %78 = vector.broadcast %cst_33 : f32 to vector<16x128xf32>
    %79 = arith.select %77, %73, %78 : vector<16x128xi1>, vector<16x128xf32>
    %80 = tpu.concatenate %79, %72 in 1 : vector<16x128xf32>, vector<16x128xf32> -> vector<16x256xf32>
    %81 = arith.truncf %80 : vector<16x256xf32> to vector<16x256xbf16>
    %c0_34 = arith.constant 0 : index
    %c0_35 = arith.constant 0 : index
    %82 = vector.load %arg8[%c0_34, %c0_35] : memref<256x128xbf16, #tpu.memory_space<vmem>>, vector<256x128xbf16>
    %cst_36 = arith.constant dense<0.000000e+00> : vector<16x128xf32>
    %83 = tpu.matmul %81, %82, %cst_36 {dimension_numbers = #tpu.dot_dimension_numbers<[1], [0], [0], [1], [0, 0, 1, 1], [], []>} : vector<16x256xbf16>, vector<256x128xbf16>, vector<16x128xf32> -> vector<16x128xf32>
    %c0_37 = arith.constant 0 : index
    %c0_38 = arith.constant 0 : index
    %84 = vector.load %arg9[%c0_37, %c0_38] : memref<1x128xf32, #tpu.memory_space<vmem>>, vector<1x128xf32>
    %85 = vector.broadcast %84 : vector<1x128xf32> to vector<16x128xf32>
    %86 = arith.addf %83, %85 : vector<16x128xf32>
    %cst_39 = arith.constant 0.000000e+00 : f32
    %87 = vector.broadcast %cst_39 : f32 to vector<16x128xf32>
    %88 = arith.maximumf %86, %87 : vector<16x128xf32>
    %89 = arith.addf %88, %56 : vector<16x128xf32>
    %cst_40 = arith.constant 0.000000e+00 : f32
    %90 = vector.broadcast %cst_40 : f32 to vector<16x128xf32>
    %91 = arith.maximumf %89, %90 : vector<16x128xf32>
    %c4_i32 = arith.constant 4 : i32
    %92 = tpu.dynamic_rotate %91 by %c4_i32 dim 0 : vector<16x128xf32>, i32 -> vector<16x128xf32>
    %c4_i32_41 = arith.constant 4 : i32
    %93 = vector.broadcast %c4_i32_41 : i32 to vector<16x1xi32>
    %94 = arith.cmpi sge, %19, %93 : vector<16x1xi32>
    %cst_42 = arith.constant 0.000000e+00 : f32
    %95 = vector.shape_cast %94 : vector<16x1xi1> to vector<16x1xi1>
    %96 = vector.broadcast %95 : vector<16x1xi1> to vector<16x128xi1>
    %97 = vector.broadcast %cst_42 : f32 to vector<16x128xf32>
    %98 = arith.select %96, %92, %97 : vector<16x128xi1>, vector<16x128xf32>
    %99 = tpu.concatenate %98, %91 in 1 : vector<16x128xf32>, vector<16x128xf32> -> vector<16x256xf32>
    %100 = arith.truncf %99 : vector<16x256xf32> to vector<16x256xbf16>
    %c0_43 = arith.constant 0 : index
    %c0_44 = arith.constant 0 : index
    %101 = vector.load %arg10[%c0_43, %c0_44] : memref<256x256xbf16, #tpu.memory_space<vmem>>, vector<256x256xbf16>
    %cst_45 = arith.constant dense<0.000000e+00> : vector<16x256xf32>
    %102 = tpu.matmul %100, %101, %cst_45 {dimension_numbers = #tpu.dot_dimension_numbers<[1], [0], [0], [1], [0, 0, 1, 1], [], []>} : vector<16x256xbf16>, vector<256x256xbf16>, vector<16x256xf32> -> vector<16x256xf32>
    %c0_46 = arith.constant 0 : index
    %c0_47 = arith.constant 0 : index
    %103 = vector.load %arg11[%c0_46, %c0_47] : memref<1x256xf32, #tpu.memory_space<vmem>>, vector<1x256xf32>
    %104 = vector.broadcast %103 : vector<1x256xf32> to vector<16x256xf32>
    %105 = arith.addf %102, %104 : vector<16x256xf32>
    %106 = vector.extract_strided_slice %105 {offsets = [0, 0], sizes = [16, 128], strides = [1, 1]} : vector<16x256xf32> to vector<16x128xf32>
    %cst_48 = arith.constant 0.000000e+00 : f32
    %107 = vector.broadcast %cst_48 : f32 to vector<16x128xf32>
    %108 = arith.maximumf %106, %107 : vector<16x128xf32>
    %109 = vector.extract_strided_slice %105 {offsets = [0, 128], sizes = [16, 128], strides = [1, 1]} : vector<16x256xf32> to vector<16x128xf32>
    %c4_i32_49 = arith.constant 4 : i32
    %110 = tpu.dynamic_rotate %108 by %c4_i32_49 dim 0 : vector<16x128xf32>, i32 -> vector<16x128xf32>
    %c4_i32_50 = arith.constant 4 : i32
    %111 = vector.broadcast %c4_i32_50 : i32 to vector<16x1xi32>
    %112 = arith.cmpi sge, %19, %111 : vector<16x1xi32>
    %cst_51 = arith.constant 0.000000e+00 : f32
    %113 = vector.shape_cast %112 : vector<16x1xi1> to vector<16x1xi1>
    %114 = vector.broadcast %113 : vector<16x1xi1> to vector<16x128xi1>
    %115 = vector.broadcast %cst_51 : f32 to vector<16x128xf32>
    %116 = arith.select %114, %110, %115 : vector<16x128xi1>, vector<16x128xf32>
    %117 = tpu.concatenate %116, %108 in 1 : vector<16x128xf32>, vector<16x128xf32> -> vector<16x256xf32>
    %118 = arith.truncf %117 : vector<16x256xf32> to vector<16x256xbf16>
    %c0_52 = arith.constant 0 : index
    %c0_53 = arith.constant 0 : index
    %119 = vector.load %arg12[%c0_52, %c0_53] : memref<256x128xbf16, #tpu.memory_space<vmem>>, vector<256x128xbf16>
    %cst_54 = arith.constant dense<0.000000e+00> : vector<16x128xf32>
    %120 = tpu.matmul %118, %119, %cst_54 {dimension_numbers = #tpu.dot_dimension_numbers<[1], [0], [0], [1], [0, 0, 1, 1], [], []>} : vector<16x256xbf16>, vector<256x128xbf16>, vector<16x128xf32> -> vector<16x128xf32>
    %c0_55 = arith.constant 0 : index
    %c0_56 = arith.constant 0 : index
    %121 = vector.load %arg13[%c0_55, %c0_56] : memref<1x128xf32, #tpu.memory_space<vmem>>, vector<1x128xf32>
    %122 = vector.broadcast %121 : vector<1x128xf32> to vector<16x128xf32>
    %123 = arith.addf %120, %122 : vector<16x128xf32>
    %cst_57 = arith.constant 0.000000e+00 : f32
    %124 = vector.broadcast %cst_57 : f32 to vector<16x128xf32>
    %125 = arith.maximumf %123, %124 : vector<16x128xf32>
    %126 = arith.addf %125, %109 : vector<16x128xf32>
    %cst_58 = arith.constant 0.000000e+00 : f32
    %127 = vector.broadcast %cst_58 : f32 to vector<16x128xf32>
    %128 = arith.maximumf %126, %127 : vector<16x128xf32>
    %129 = vector.shape_cast %128 : vector<16x128xf32> to vector<1x16x128xf32>
    %130 = arith.truncf %129 : vector<1x16x128xf32> to vector<1x16x128xbf16>
    %c0_59 = arith.constant 0 : index
    %c0_60 = arith.constant 0 : index
    %c0_61 = arith.constant 0 : index
    %131 = vector.load %arg14[%c0_59, %c0_60, %c0_61] : memref<1x16x128xbf16, #tpu.memory_space<vmem>>, vector<1x16x128xbf16>
    tpu.vector_store %arg14[%c0_59, %c0_60, %c0_61], %130 {strides = array<i32>} : memref<1x16x128xbf16, #tpu.memory_space<vmem>>, vector<1x16x128xbf16>,
    return
  }
  func.func @transform_0(%arg0: i32) -> (i32, i32, i32) {
    %c0_i32 = arith.constant 0 : i32
    %c0_i32_0 = arith.constant 0 : i32
    %c0_i32_1 = arith.constant 0 : i32
    return %arg0, %c0_i32, %c0_i32_0 : i32, i32, i32
  }
  func.func @transform_1(%arg0: i32) -> (i32, i32) {
    %c0_i32 = arith.constant 0 : i32
    %c0_i32_0 = arith.constant 0 : i32
    %c0_i32_1 = arith.constant 0 : i32
    return %c0_i32, %c0_i32_0 : i32, i32
  }
  func.func @transform_2(%arg0: i32) -> (i32, i32) {
    %c0_i32 = arith.constant 0 : i32
    %c0_i32_0 = arith.constant 0 : i32
    %c0_i32_1 = arith.constant 0 : i32
    return %c0_i32, %c0_i32_0 : i32, i32
  }
  func.func @transform_3(%arg0: i32) -> (i32, i32) {
    %c0_i32 = arith.constant 0 : i32
    %c0_i32_0 = arith.constant 0 : i32
    %c0_i32_1 = arith.constant 0 : i32
    return %c0_i32, %c0_i32_0 : i32, i32
  }
  func.func @transform_4(%arg0: i32) -> (i32, i32) {
    %c0_i32 = arith.constant 0 : i32
    %c0_i32_0 = arith.constant 0 : i32
    %c0_i32_1 = arith.constant 0 : i32
    return %c0_i32, %c0_i32_0 : i32, i32
  }
  func.func @transform_5(%arg0: i32) -> (i32, i32) {
    %c0_i32 = arith.constant 0 : i32
    %c0_i32_0 = arith.constant 0 : i32
    %c0_i32_1 = arith.constant 0 : i32
    return %c0_i32, %c0_i32_0 : i32, i32
  }
  func.func @transform_6(%arg0: i32) -> (i32, i32) {
    %c0_i32 = arith.constant 0 : i32
    %c0_i32_0 = arith.constant 0 : i32
    %c0_i32_1 = arith.constant 0 : i32
    return %c0_i32, %c0_i32_0 : i32, i32
  }
  func.func @transform_7(%arg0: i32) -> (i32, i32) {
    %c0_i32 = arith.constant 0 : i32
    %c0_i32_0 = arith.constant 0 : i32
    %c0_i32_1 = arith.constant 0 : i32
    return %c0_i32, %c0_i32_0 : i32, i32
  }
  func.func @transform_8(%arg0: i32) -> (i32, i32) {
    %c0_i32 = arith.constant 0 : i32
    %c0_i32_0 = arith.constant 0 : i32
    %c0_i32_1 = arith.constant 0 : i32
    return %c0_i32, %c0_i32_0 : i32, i32
  }
  func.func @transform_9(%arg0: i32) -> (i32, i32) {
    %c0_i32 = arith.constant 0 : i32
    %c0_i32_0 = arith.constant 0 : i32
    %c0_i32_1 = arith.constant 0 : i32
    return %c0_i32, %c0_i32_0 : i32, i32
  }
  func.func @transform_10(%arg0: i32) -> (i32, i32) {
    %c0_i32 = arith.constant 0 : i32
    %c0_i32_0 = arith.constant 0 : i32
    %c0_i32_1 = arith.constant 0 : i32
    return %c0_i32, %c0_i32_0 : i32, i32
  }
  func.func @transform_11(%arg0: i32) -> (i32, i32) {
    %c0_i32 = arith.constant 0 : i32
    %c0_i32_0 = arith.constant 0 : i32
    %c0_i32_1 = arith.constant 0 : i32
    return %c0_i32, %c0_i32_0 : i32, i32
  }
  func.func @transform_12(%arg0: i32) -> (i32, i32) {
    %c0_i32 = arith.constant 0 : i32
    %c0_i32_0 = arith.constant 0 : i32
    %c0_i32_1 = arith.constant 0 : i32
    return %c0_i32, %c0_i32_0 : i32, i32
  }
  func.func @transform_13(%arg0: i32) -> (i32, i32, i32) {
    %c0_i32 = arith.constant 0 : i32
    %c0_i32_0 = arith.constant 0 : i32
    %c0_i32_1 = arith.constant 0 : i32
    return %arg0, %c0_i32, %c0_i32_0 : i32, i32, i32
  }
}

</mosaic_0001>

<llo_original>
// kernel: temporal_conv_net.1
$region0: #{temporal_conv_net.1}
  #allocation0 [shape = 'u32[]', space=smem, size = 0x4, offset = 0x4, fixed_abs, tag = 'smem constant byte address 0x4 - core index']
  #allocation1 [shape = 'u32[144,128]{1,0:T(1,128)}', space=vmem, size = 0x12000, scoped, tag = 'internal scratch']
  %s0 = inlined_call_operand.vmem [shape: bf16[2,16,128], index: 0, kind: input, shape index: {}]
  %s1 = inlined_call_operand.hbm [shape: bf16[256,256], index: 1, kind: input, shape index: {}]
  %s2 = inlined_call_operand.vmem [shape: f32[1,256], index: 2, kind: input, shape index: {}]
  %s3 = inlined_call_operand.hbm [shape: bf16[256,128], index: 3, kind: input, shape index: {}]
  %s4 = inlined_call_operand.vmem [shape: f32[1,128], index: 4, kind: input, shape index: {}]
  %s5 = inlined_call_operand.hbm [shape: bf16[256,128], index: 5, kind: input, shape index: {}]
  %s6 = inlined_call_operand.vmem [shape: f32[1,128], index: 6, kind: input, shape index: {}]
  %s7 = inlined_call_operand.hbm [shape: bf16[256,128], index: 7, kind: input, shape index: {}]
  %s8 = inlined_call_operand.vmem [shape: f32[1,128], index: 8, kind: input, shape index: {}]
  %s9 = inlined_call_operand.hbm [shape: bf16[256,256], index: 9, kind: input, shape index: {}]
  %s10 = inlined_call_operand.vmem [shape: f32[1,256], index: 10, kind: input, shape index: {}]
  %s11 = inlined_call_operand.hbm [shape: bf16[256,128], index: 11, kind: input, shape index: {}]
  %s12 = inlined_call_operand.vmem [shape: f32[1,128], index: 12, kind: input, shape index: {}]
  %s13 = inlined_call_operand.vmem [shape: bf16[2,16,128], index: 13, kind: output, shape index: {}]
  %s14 = sld [smem:[#allocation0]]
  $region109: #{temporal_conv_net.1} parent=0
    _
  %s16 = ssub.s32 1, %s14
  %s17 = scalar_select 0, %s16, %s14
  $region1: #{temporal_conv_net.1} parent=0
    #allocation2 [shape = 'u8[131072]{0}', space=vmem, size = 0x20000, scoped, tag = 'input window, operand 1, single buffered']
    #allocation3 [shape = 's32[2]{0}', space=sflag, size = 0x8, scoped, tag = 'scoped memory for temporal_conv_net.1']
    #allocation4 [shape = 'u8[65536]{0}', space=vmem, size = 0x10000, scoped, tag = 'input window, operand 3, single buffered']
    #allocation5 [shape = 's32[1]{0}', space=sflag, size = 0x4, scoped, tag = 'scoped memory for temporal_conv_net.1']
    #allocation6 [shape = 'u8[65536]{0}', space=vmem, size = 0x10000, scoped, tag = 'input window, operand 5, single buffered']
    #allocation7 [shape = 'u8[65536]{0}', space=vmem, size = 0x10000, scoped, tag = 'input window, operand 7, single buffered']
    #allocation8 [shape = 's32[1]{0}', space=sflag, size = 0x4, scoped, tag = 'scoped memory for temporal_conv_net.1']
    #allocation9 [shape = 'u8[131072]{0}', space=vmem, size = 0x20000, scoped, tag = 'input window, operand 9, single buffered']
    #allocation10 [shape = 'u8[65536]{0}', space=vmem, size = 0x10000, scoped, tag = 'input window, operand 11, single buffered']
    #allocation11 [shape = 's32[1]{0}', space=sflag, size = 0x4, scoped, tag = 'scoped memory for temporal_conv_net.1']
    %18 = vsyncpa [#allocation3], 0
    %19 = vsyncpa [#allocation5], 0
    %20 = vsyncpa [#allocation8], 0
    %21 = vsyncpa [#allocation11], 0
    loop: start=0, step=1, limit=4
    $region2: #{temporal_conv_net.1} parent=1 // loop_pre_header
      _
    $region3: #{temporal_conv_net.1} parent=1 // loop_header
      %s23 = sphi 0, %s27
      %p24 = scmp.ge.s32.totalorder %s23, 4
      %s33 = sphi 0, %s35
      %s36 = sphi 0, %s33
      %s37 = sphi 0, %s36
      %s53 = sphi 0, %s37
      %s57 = sphi 0, %s57
      %s59 = sphi 0, %s57
      %s60 = sphi 0, %s59
      %s74 = sphi 0, %s60
      %s78 = sphi 0, %s78
      %s80 = sphi 0, %s78
      %s81 = sphi 0, %s80
      %s95 = sphi 0, %s81
      %s99 = sphi 0, %s99
      %s101 = sphi 0, %s99
      %s102 = sphi 0, %s101
      %s116 = sphi 0, %s102
      %s120 = sphi 0, %s120
      %s122 = sphi 0, %s120
      %s123 = sphi 0, %s122
      %s137 = sphi 0, %s123
      %s141 = sphi 0, %s141
      %s143 = sphi 0, %s141
      %s144 = sphi 0, %s143
      %s158 = sphi 0, %s144
      %s162 = sphi 0, %s162
      %s164 = sphi 0, %s162
      %s165 = sphi 0, %s164
      %s179 = sphi 0, %s165
      %s183 = sphi 0, %s183
      %s185 = sphi 0, %s183
      %s186 = sphi 0, %s185
      %s200 = sphi 0, %s186
      %s204 = sphi 0, %s204
      %s206 = sphi 0, %s204
      %s207 = sphi 0, %s206
      %s221 = sphi 0, %s207
      %s225 = sphi 0, %s225
      %s227 = sphi 0, %s225
      %s228 = sphi 0, %s227
      %s242 = sphi 0, %s228
      %s246 = sphi 0, %s246
      %s248 = sphi 0, %s246
      %s249 = sphi 0, %s248
      %s263 = sphi 0, %s249
      %s267 = sphi 0, %s267
      %s269 = sphi 0, %s267
      %s270 = sphi 0, %s269
      %s284 = sphi 0, %s270
      %s288 = sphi 0, %s288
      %s290 = sphi 0, %s288
      %s291 = sphi 0, %s290
      %s305 = sphi 0, %s291
      %s311 = sphi 0, %s313
      %s314 = sphi 0, %s311
      %s315 = sphi 0, %s314
      %s331 = sphi 0, %s315
    $region4: #{temporal_conv_net.1} parent=1 // loop_header_branch
      %26 = sbr.rel (%p24) target = $region8
    $region5: #{temporal_conv_net.1} parent=1 // loop_body
      %s28 = ssub.s32 %s23, 1
      %s29 = ssub.s32 %s23, 2
      %s30 = sadd.s32 %s23, 1
      %s31 = ssub.s32 %s23, %s30
      %p32 = scmp.eq.s32.totalorder %s31, 0
      %s34 = sadd.s32 %s33, 1
      %s35 = scalar_select %p32, %s33, %s34
      %p38 = pneg %p32
      %p39 = scmp.eq.s32.totalorder %s23, 1
      %p40 = por %p38, %p39
      %p41 = scmp.ne.s32.totalorder %s33, %s36
      %p42 = scmp.eq.s32.totalorder %s23, 0
      %p43 = por %p41, %p42
      %p44 = scmp.ne.s32.totalorder %s33, %s36
      %p45 = scmp.eq.s32.totalorder %s28, 1
      %p46 = por %p44, %p45
      %p47 = scmp.ne.s32.totalorder %s36, %s37
      %p48 = scmp.eq.s32.totalorder %s28, 0
      %p49 = por %p47, %p48
      %p50 = scmp.ne.s32.totalorder %s36, %s37
      %p51 = scmp.eq.s32.totalorder %s29, 1
      %p52 = por %p50, %p51
      %p54 = scmp.ne.s32.totalorder %s37, %s53
      %p55 = scmp.eq.s32.totalorder %s29, 0
      %p56 = por %p54, %p55
      %s58 = sadd.s32 %s57, 1
      %p61 = scmp.eq.s32.totalorder %s23, 1
      %p62 = scmp.ne.s32.totalorder %s57, %s59
      %p63 = scmp.eq.s32.totalorder %s23, 0
      %p64 = por %p62, %p63
      %p65 = scmp.ne.s32.totalorder %s57, %s59
      %p66 = scmp.eq.s32.totalorder %s28, 1
      %p67 = por %p65, %p66
      %p68 = scmp.ne.s32.totalorder %s59, %s60
      %p69 = scmp.eq.s32.totalorder %s28, 0
      %p70 = por %p68, %p69
      %p71 = scmp.ne.s32.totalorder %s59, %s60
      %p72 = scmp.eq.s32.totalorder %s29, 1
      %p73 = por %p71, %p72
      %p75 = scmp.ne.s32.totalorder %s60, %s74
      %p76 = scmp.eq.s32.totalorder %s29, 0
      %p77 = por %p75, %p76
      %s79 = sadd.s32 %s78, 1
      %p82 = scmp.eq.s32.totalorder %s23, 1
      %p83 = scmp.ne.s32.totalorder %s78, %s80
      %p84 = scmp.eq.s32.totalorder %s23, 0
      %p85 = por %p83, %p84
      %p86 = scmp.ne.s32.totalorder %s78, %s80
      %p87 = scmp.eq.s32.totalorder %s28, 1
      %p88 = por %p86, %p87
      %p89 = scmp.ne.s32.totalorder %s80, %s81
      %p90 = scmp.eq.s32.totalorder %s28, 0
      %p91 = por %p89, %p90
      %p92 = scmp.ne.s32.totalorder %s80, %s81
      %p93 = scmp.eq.s32.totalorder %s29, 1
      %p94 = por %p92, %p93
      %p96 = scmp.ne.s32.totalorder %s81, %s95
      %p97 = scmp.eq.s32.totalorder %s29, 0
      %p98 = por %p96, %p97
      %s100 = sadd.s32 %s99, 1
      %p103 = scmp.eq.s32.totalorder %s23, 1
      %p104 = scmp.ne.s32.totalorder %s99, %s101
      %p105 = scmp.eq.s32.totalorder %s23, 0
      %p106 = por %p104, %p105
      %p107 = scmp.ne.s32.totalorder %s99, %s101
      %p108 = scmp.eq.s32.totalorder %s28, 1
      %p109 = por %p107, %p108
      %p110 = scmp.ne.s32.totalorder %s101, %s102
      %p111 = scmp.eq.s32.totalorder %s28, 0
      %p112 = por %p110, %p111
      %p113 = scmp.ne.s32.totalorder %s101, %s102
      %p114 = scmp.eq.s32.totalorder %s29, 1
      %p115 = por %p113, %p114
      %p117 = scmp.ne.s32.totalorder %s102, %s116
      %p118 = scmp.eq.s32.totalorder %s29, 0
      %p119 = por %p117, %p118
      %s121 = sadd.s32 %s120, 1
      %p124 = scmp.eq.s32.totalorder %s23, 1
      %p125 = scmp.ne.s32.totalorder %s120, %s122
      %p126 = scmp.eq.s32.totalorder %s23, 0
      %p127 = por %p125, %p126
      %p128 = scmp.ne.s32.totalorder %s120, %s122
      %p129 = scmp.eq.s32.totalorder %s28, 1
      %p130 = por %p128, %p129
      %p131 = scmp.ne.s32.totalorder %s122, %s123
      %p132 = scmp.eq.s32.totalorder %s28, 0
      %p133 = por %p131, %p132
      %p134 = scmp.ne.s32.totalorder %s122, %s123
      %p135 = scmp.eq.s32.totalorder %s29, 1
      %p136 = por %p134, %p135
      %p138 = scmp.ne.s32.totalorder %s123, %s137
      %p139 = scmp.eq.s32.totalorder %s29, 0
      %p140 = por %p138, %p139
      %s142 = sadd.s32 %s141, 1
      %p145 = scmp.eq.s32.totalorder %s23, 1
      %p146 = scmp.ne.s32.totalorder %s141, %s143
      %p147 = scmp.eq.s32.totalorder %s23, 0
      %p148 = por %p146, %p147
      %p149 = scmp.ne.s32.totalorder %s141, %s143
      %p150 = scmp.eq.s32.totalorder %s28, 1
      %p151 = por %p149, %p150
      %p152 = scmp.ne.s32.totalorder %s143, %s144
      %p153 = scmp.eq.s32.totalorder %s28, 0
      %p154 = por %p152, %p153
      %p155 = scmp.ne.s32.totalorder %s143, %s144
      %p156 = scmp.eq.s32.totalorder %s29, 1
      %p157 = por %p155, %p156
      %p159 = scmp.ne.s32.totalorder %s144, %s158
      %p160 = scmp.eq.s32.totalorder %s29, 0
      %p161 = por %p159, %p160
      %s163 = sadd.s32 %s162, 1
      %p166 = scmp.eq.s32.totalorder %s23, 1
      %p167 = scmp.ne.s32.totalorder %s162, %s164
      %p168 = scmp.eq.s32.totalorder %s23, 0
      %p169 = por %p167, %p168
      %p170 = scmp.ne.s32.totalorder %s162, %s164
      %p171 = scmp.eq.s32.totalorder %s28, 1
      %p172 = por %p170, %p171
      %p173 = scmp.ne.s32.totalorder %s164, %s165
      %p174 = scmp.eq.s32.totalorder %s28, 0
      %p175 = por %p173, %p174
      %p176 = scmp.ne.s32.totalorder %s164, %s165
      %p177 = scmp.eq.s32.totalorder %s29, 1
      %p178 = por %p176, %p177
      %p180 = scmp.ne.s32.totalorder %s165, %s179
      %p181 = scmp.eq.s32.totalorder %s29, 0
      %p182 = por %p180, %p181
      %s184 = sadd.s32 %s183, 1
      %p187 = scmp.eq.s32.totalorder %s23, 1
      %p188 = scmp.ne.s32.totalorder %s183, %s185
      %p189 = scmp.eq.s32.totalorder %s23, 0
      %p190 = por %p188, %p189
      %p191 = scmp.ne.s32.totalorder %s183, %s185
      %p192 = scmp.eq.s32.totalorder %s28, 1
      %p193 = por %p191, %p192
      %p194 = scmp.ne.s32.totalorder %s185, %s186
      %p195 = scmp.eq.s32.totalorder %s28, 0
      %p196 = por %p194, %p195
      %p197 = scmp.ne.s32.totalorder %s185, %s186
      %p198 = scmp.eq.s32.totalorder %s29, 1
      %p199 = por %p197, %p198
      %p201 = scmp.ne.s32.totalorder %s186, %s200
      %p202 = scmp.eq.s32.totalorder %s29, 0
      %p203 = por %p201, %p202
      %s205 = sadd.s32 %s204, 1
      %p208 = scmp.eq.s32.totalorder %s23, 1
      %p209 = scmp.ne.s32.totalorder %s204, %s206
      %p210 = scmp.eq.s32.totalorder %s23, 0
      %p211 = por %p209, %p210
      %p212 = scmp.ne.s32.totalorder %s204, %s206
      %p213 = scmp.eq.s32.totalorder %s28, 1
      %p214 = por %p212, %p213
      %p215 = scmp.ne.s32.totalorder %s206, %s207
      %p216 = scmp.eq.s32.totalorder %s28, 0
      %p217 = por %p215, %p216
      %p218 = scmp.ne.s32.totalorder %s206, %s207
      %p219 = scmp.eq.s32.totalorder %s29, 1
      %p220 = por %p218, %p219
      %p222 = scmp.ne.s32.totalorder %s207, %s221
      %p223 = scmp.eq.s32.totalorder %s29, 0
      %p224 = por %p222, %p223
      %s226 = sadd.s32 %s225, 1
      %p229 = scmp.eq.s32.totalorder %s23, 1
      %p230 = scmp.ne.s32.totalorder %s225, %s227
      %p231 = scmp.eq.s32.totalorder %s23, 0
      %p232 = por %p230, %p231
      %p233 = scmp.ne.s32.totalorder %s225, %s227
      %p234 = scmp.eq.s32.totalorder %s28, 1
      %p235 = por %p233, %p234
      %p236 = scmp.ne.s32.totalorder %s227, %s228
      %p237 = scmp.eq.s32.totalorder %s28, 0
      %p238 = por %p236, %p237
      %p239 = scmp.ne.s32.totalorder %s227, %s228
      %p240 = scmp.eq.s32.totalorder %s29, 1
      %p241 = por %p239, %p240
      %p243 = scmp.ne.s32.totalorder %s228, %s242
      %p244 = scmp.eq.s32.totalorder %s29, 0
      %p245 = por %p243, %p244
      %s247 = sadd.s32 %s246, 1
      %p250 = scmp.eq.s32.totalorder %s23, 1
      %p251 = scmp.ne.s32.totalorder %s246, %s248
      %p252 = scmp.eq.s32.totalorder %s23, 0
      %p253 = por %p251, %p252
      %p254 = scmp.ne.s32.totalorder %s246, %s248
      %p255 = scmp.eq.s32.totalorder %s28, 1
      %p256 = por %p254, %p255
      %p257 = scmp.ne.s32.totalorder %s248, %s249
      %p258 = scmp.eq.s32.totalorder %s28, 0
      %p259 = por %p257, %p258
      %p260 = scmp.ne.s32.totalorder %s248, %s249
      %p261 = scmp.eq.s32.totalorder %s29, 1
      %p262 = por %p260, %p261
      %p264 = scmp.ne.s32.totalorder %s249, %s263
      %p265 = scmp.eq.s32.totalorder %s29, 0
      %p266 = por %p264, %p265
      %s268 = sadd.s32 %s267, 1
      %p271 = scmp.eq.s32.totalorder %s23, 1
      %p272 = scmp.ne.s32.totalorder %s267, %s269
      %p273 = scmp.eq.s32.totalorder %s23, 0
      %p274 = por %p272, %p273
      %p275 = scmp.ne.s32.totalorder %s267, %s269
      %p276 = scmp.eq.s32.totalorder %s28, 1
      %p277 = por %p275, %p276
      %p278 = scmp.ne.s32.totalorder %s269, %s270
      %p279 = scmp.eq.s32.totalorder %s28, 0
      %p280 = por %p278, %p279
      %p281 = scmp.ne.s32.totalorder %s269, %s270
      %p282 = scmp.eq.s32.totalorder %s29, 1
      %p283 = por %p281, %p282
      %p285 = scmp.ne.s32.totalorder %s270, %s284
      %p286 = scmp.eq.s32.totalorder %s29, 0
      %p287 = por %p285, %p286
      %s289 = sadd.s32 %s288, 1
      %p292 = scmp.eq.s32.totalorder %s23, 1
      %p293 = scmp.ne.s32.totalorder %s288, %s290
      %p294 = scmp.eq.s32.totalorder %s23, 0
      %p295 = por %p293, %p294
      %p296 = scmp.ne.s32.totalorder %s288, %s290
      %p297 = scmp.eq.s32.totalorder %s28, 1
      %p298 = por %p296, %p297
      %p299 = scmp.ne.s32.totalorder %s290, %s291
      %p300 = scmp.eq.s32.totalorder %s28, 0
      %p301 = por %p299, %p300
      %p302 = scmp.ne.s32.totalorder %s290, %s291
      %p303 = scmp.eq.s32.totalorder %s29, 1
      %p304 = por %p302, %p303
      %p306 = scmp.ne.s32.totalorder %s291, %s305
      %p307 = scmp.eq.s32.totalorder %s29, 0
      %p308 = por %p306, %p307
      %s309 = ssub.s32 %s23, %s30
      %p310 = scmp.eq.s32.totalorder %s309, 0
      %s312 = sadd.s32 %s311, 1
      %s313 = scalar_select %p310, %s311, %s312
      %p316 = pneg %p310
      %p317 = scmp.eq.s32.totalorder %s23, 1
      %p318 = por %p316, %p317
      %p319 = scmp.ne.s32.totalorder %s311, %s314
      %p320 = scmp.eq.s32.totalorder %s23, 0
      %p321 = por %p319, %p320
      %p322 = scmp.ne.s32.totalorder %s311, %s314
      %p323 = scmp.eq.s32.totalorder %s28, 1
      %p324 = por %p322, %p323
      %p325 = scmp.ne.s32.totalorder %s314, %s315
      %p326 = scmp.eq.s32.totalorder %s28, 0
      %p327 = por %p325, %p326
      %p328 = scmp.ne.s32.totalorder %s314, %s315
      %p329 = scmp.eq.s32.totalorder %s29, 1
      %p330 = por %p328, %p329
      %p332 = scmp.ne.s32.totalorder %s315, %s331
      %p333 = scmp.eq.s32.totalorder %s29, 0
      %p334 = por %p332, %p333
      %p335 = scmp.le.s32.totalorder 1, %s23
      %p336 = scmp.lt.s32.totalorder %s23, 3
      %p337 = pnand %p335, %p336
      %p338 = pneg %p337
      // Predicated region
      $region9: #{temporal_conv_net.1} parent=5 // pred_check
        _
      $region10: #{temporal_conv_net.1} parent=5 // pred_check_branch
        %340 = sbr.rel (%p337) target = $region12
      $region11: #{temporal_conv_net.1} parent=5 // pred_region
        %s341 = ssub.s32 %s23, 1
        // Predicated region
        $region13: #{temporal_conv_net.1} parent=11 // pred_check
          %p342 = pneg %p70
        $region14: #{temporal_conv_net.1} parent=11 // pred_check_branch
          %344 = sbr.rel (%p342) target = $region16
        $region15: #{temporal_conv_net.1} parent=11 // pred_region
          %s346 = ssub.s32 4096, 4096
          %347 = vsyncadd [#allocation3], %s346
          %s348 = sshll.u32 [#allocation2], 4
          %s349 = int_to_ptr.vmem [resolvable:$true] %s348
          %354 = dma.hbm_to_vmem [thread:$0]  %s1, 4096, %s349, [#allocation3], 128, 128, 8
        $region16: #{temporal_conv_net.1} parent=11 // pred_fallthru
          _
        // Predicated region
        $region17: #{temporal_conv_net.1} parent=11 // pred_check
          %p355 = pneg %p91
        $region18: #{temporal_conv_net.1} parent=11 // pred_check_branch
          %357 = sbr.rel (%p355) target = $region20
        $region19: #{temporal_conv_net.1} parent=11 // pred_region
          _
        $region20: #{temporal_conv_net.1} parent=11 // pred_fallthru
          _
        // Predicated region
        $region21: #{temporal_conv_net.1} parent=11 // pred_check
          %p358 = pneg %p112
        $region22: #{temporal_conv_net.1} parent=11 // pred_check_branch
          %360 = sbr.rel (%p358) target = $region24
        $region23: #{temporal_conv_net.1} parent=11 // pred_region
          %s362 = ssub.s32 2048, 2048
          %363 = vsyncadd [#allocation5], %s362
          %s364 = sshll.u32 [#allocation4], 4
          %s365 = int_to_ptr.vmem [resolvable:$true] %s364
          %370 = dma.hbm_to_vmem [thread:$0]  %s3, 2048, %s365, [#allocation5], 64, 64, 4
        $region24: #{temporal_conv_net.1} parent=11 // pred_fallthru
          _
        // Predicated region
        $region25: #{temporal_conv_net.1} parent=11 // pred_check
          %p371 = pneg %p133
        $region26: #{temporal_conv_net.1} parent=11 // pred_check_branch
          %373 = sbr.rel (%p371) target = $region28
        $region27: #{temporal_conv_net.1} parent=11 // pred_region
          _
        $region28: #{temporal_conv_net.1} parent=11 // pred_fallthru
          _
        // Predicated region
        $region29: #{temporal_conv_net.1} parent=11 // pred_check
          %p374 = pneg %p154
        $region30: #{temporal_conv_net.1} parent=11 // pred_check_branch
          %376 = sbr.rel (%p374) target = $region32
        $region31: #{temporal_conv_net.1} parent=11 // pred_region
          %s378 = ssub.s32 2048, 2048
          %379 = vsyncadd [#allocation5], %s378
          %s380 = sshll.u32 [#allocation6], 4
          %s381 = int_to_ptr.vmem [resolvable:$true] %s380
          %386 = dma.hbm_to_vmem [thread:$0]  %s5, 2048, %s381, [#allocation5], 64, 64, 4
        $region32: #{temporal_conv_net.1} parent=11 // pred_fallthru
          _
        // Predicated region
        $region33: #{temporal_conv_net.1} parent=11 // pred_check
          %p387 = pneg %p175
        $region34: #{temporal_conv_net.1} parent=11 // pred_check_branch
          %389 = sbr.rel (%p387) target = $region36
        $region35: #{temporal_conv_net.1} parent=11 // pred_region
          _
        $region36: #{temporal_conv_net.1} parent=11 // pred_fallthru
          _
        // Predicated region
        $region37: #{temporal_conv_net.1} parent=11 // pred_check
          %p390 = pneg %p196
        $region38: #{temporal_conv_net.1} parent=11 // pred_check_branch
          %392 = sbr.rel (%p390) target = $region40
        $region39: #{temporal_conv_net.1} parent=11 // pred_region
          %s394 = ssub.s32 2048, 2048
          %395 = vsyncadd [#allocation8], %s394
          %s396 = sshll.u32 [#allocation7], 4
          %s397 = int_to_ptr.vmem [resolvable:$true] %s396
          %402 = dma.hbm_to_vmem [thread:$0]  %s7, 2048, %s397, [#allocation8], 64, 64, 4
        $region40: #{temporal_conv_net.1} parent=11 // pred_fallthru
          _
        // Predicated region
        $region41: #{temporal_conv_net.1} parent=11 // pred_check
          %p403 = pneg %p217
        $region42: #{temporal_conv_net.1} parent=11 // pred_check_branch
          %405 = sbr.rel (%p403) target = $region44
        $region43: #{temporal_conv_net.1} parent=11 // pred_region
          _
        $region44: #{temporal_conv_net.1} parent=11 // pred_fallthru
          _
        // Predicated region
        $region45: #{temporal_conv_net.1} parent=11 // pred_check
          %p406 = pneg %p238
        $region46: #{temporal_conv_net.1} parent=11 // pred_check_branch
          %408 = sbr.rel (%p406) target = $region48
        $region47: #{temporal_conv_net.1} parent=11 // pred_region
          %s410 = ssub.s32 4096, 4096
          %411 = vsyncadd [#allocation8], %s410
          %s412 = sshll.u32 [#allocation9], 4
          %s413 = int_to_ptr.vmem [resolvable:$true] %s412
          %418 = dma.hbm_to_vmem [thread:$0]  %s9, 4096, %s413, [#allocation8], 128, 128, 8
        $region48: #{temporal_conv_net.1} parent=11 // pred_fallthru
          _
        // Predicated region
        $region49: #{temporal_conv_net.1} parent=11 // pred_check
          %p419 = pneg %p259
        $region50: #{temporal_conv_net.1} parent=11 // pred_check_branch
          %421 = sbr.rel (%p419) target = $region52
        $region51: #{temporal_conv_net.1} parent=11 // pred_region
          _
        $region52: #{temporal_conv_net.1} parent=11 // pred_fallthru
          _
        // Predicated region
        $region53: #{temporal_conv_net.1} parent=11 // pred_check
          %p422 = pneg %p280
        $region54: #{temporal_conv_net.1} parent=11 // pred_check_branch
          %424 = sbr.rel (%p422) target = $region56
        $region55: #{temporal_conv_net.1} parent=11 // pred_region
          %s426 = ssub.s32 2048, 2048
          %427 = vsyncadd [#allocation11], %s426
          %s428 = sshll.u32 [#allocation10], 4
          %s429 = int_to_ptr.vmem [resolvable:$true] %s428
          %434 = dma.hbm_to_vmem [thread:$0]  %s11, 2048, %s429, [#allocation11], 64, 64, 4
        $region56: #{temporal_conv_net.1} parent=11 // pred_fallthru
          _
        // Predicated region
        $region57: #{temporal_conv_net.1} parent=11 // pred_check
          %p435 = pneg %p301
        $region58: #{temporal_conv_net.1} parent=11 // pred_check_branch
          %437 = sbr.rel (%p435) target = $region60
        $region59: #{temporal_conv_net.1} parent=11 // pred_region
          _
        $region60: #{temporal_conv_net.1} parent=11 // pred_fallthru
          _
      $region12: #{temporal_conv_net.1} parent=5 // pred_fallthru
        _
      %p438 = scmp.lt.s32.totalorder %s23, 2
      // Predicated region
      $region61: #{temporal_conv_net.1} parent=5 // pred_check
        %p439 = pneg %p438
      $region62: #{temporal_conv_net.1} parent=5 // pred_check_branch
        %441 = sbr.rel (%p439) target = $region64
      $region63: #{temporal_conv_net.1} parent=5 // pred_region
        // Predicated region
        $region65: #{temporal_conv_net.1} parent=63 // pred_check
          %p442 = pneg %p43
        $region66: #{temporal_conv_net.1} parent=63 // pred_check_branch
          %444 = sbr.rel (%p442) target = $region68
        $region67: #{temporal_conv_net.1} parent=63 // pred_region
          %p445 = scmp.lt.s32.totalorder %s23, 1
          %s446 = scalar_select %p445, %s23, 1
          %s447 = smul.addr %s446, 2
          %s448 = smul.addr %s447, 4
          %s449 = scalar_lea.vmem %s0, %s448
        $region68: #{temporal_conv_net.1} parent=63 // pred_fallthru
          _
      $region64: #{temporal_conv_net.1} parent=5 // pred_fallthru
        _
      %p450 = scmp.le.s32.totalorder 1, %s23
      %p451 = scmp.lt.s32.totalorder %s23, 3
      %p452 = pnand %p450, %p451
      %p453 = pneg %p452
      // Predicated region
      $region69: #{temporal_conv_net.1} parent=5 // pred_check
        _
      $region70: #{temporal_conv_net.1} parent=5 // pred_check_branch
        %455 = sbr.rel (%p452) target = $region72
      $region71: #{temporal_conv_net.1} parent=5 // pred_region
        %s456 = ssub.s32 %s23, 1
        // Predicated region
        $region73: #{temporal_conv_net.1} parent=71 // pred_check
          %p457 = pneg %p70
        $region74: #{temporal_conv_net.1} parent=71 // pred_check_branch
          %459 = sbr.rel (%p457) target = $region76
        $region75: #{temporal_conv_net.1} parent=71 // pred_region
          %460 = dma.done [#allocation3], 4096
        $region76: #{temporal_conv_net.1} parent=71 // pred_fallthru
          _
        // Predicated region
        $region77: #{temporal_conv_net.1} parent=71 // pred_check
          %p461 = pneg %p112
        $region78: #{temporal_conv_net.1} parent=71 // pred_check_branch
          %463 = sbr.rel (%p461) target = $region80
        $region79: #{temporal_conv_net.1} parent=71 // pred_region
          %464 = dma.done [#allocation5], 2048
        $region80: #{temporal_conv_net.1} parent=71 // pred_fallthru
          _
        // Predicated region
        $region81: #{temporal_conv_net.1} parent=71 // pred_check
          %p465 = pneg %p154
        $region82: #{temporal_conv_net.1} parent=71 // pred_check_branch
          %467 = sbr.rel (%p465) target = $region84
        $region83: #{temporal_conv_net.1} parent=71 // pred_region
          %468 = dma.done [#allocation5], 2048
        $region84: #{temporal_conv_net.1} parent=71 // pred_fallthru
          _
        // Predicated region
        $region85: #{temporal_conv_net.1} parent=71 // pred_check
          %p469 = pneg %p196
        $region86: #{temporal_conv_net.1} parent=71 // pred_check_branch
          %471 = sbr.rel (%p469) target = $region88
        $region87: #{temporal_conv_net.1} parent=71 // pred_region
          %472 = dma.done [#allocation8], 2048
        $region88: #{temporal_conv_net.1} parent=71 // pred_fallthru
          _
        // Predicated region
        $region89: #{temporal_conv_net.1} parent=71 // pred_check
          %p473 = pneg %p238
        $region90: #{temporal_conv_net.1} parent=71 // pred_check_branch
          %475 = sbr.rel (%p473) target = $region92
        $region91: #{temporal_conv_net.1} parent=71 // pred_region
          %476 = dma.done [#allocation8], 4096
        $region92: #{temporal_conv_net.1} parent=71 // pred_fallthru
          _
        // Predicated region
        $region93: #{temporal_conv_net.1} parent=71 // pred_check
          %p477 = pneg %p280
        $region94: #{temporal_conv_net.1} parent=71 // pred_check_branch
          %479 = sbr.rel (%p477) target = $region96
        $region95: #{temporal_conv_net.1} parent=71 // pred_region
          %480 = dma.done [#allocation11], 2048
        $region96: #{temporal_conv_net.1} parent=71 // pred_fallthru
          _
        %p481 = scmp.lt.s32.totalorder %s28, 1
        %s482 = scalar_select %p481, %s28, 1
        %s483 = smul.addr %s482, 2
        %s484 = smul.addr %s483, 4
        %s485 = scalar_lea.vmem %s0, %s484
        %p486 = pneg %p49
        %p487 = pneg %p46
        %p488 = pneg %p70
        %p489 = pneg %p67
        %p490 = pneg %p91
        %p491 = pneg %p88
        %p492 = pneg %p112
        %p493 = pneg %p109
        %p494 = pneg %p133
        %p495 = pneg %p130
        %p496 = pneg %p154
        %p497 = pneg %p151
        %p498 = pneg %p175
        %p499 = pneg %p172
        %p500 = pneg %p196
        %p501 = pneg %p193
        %p502 = pneg %p217
        %p503 = pneg %p214
        %p504 = pneg %p238
        %p505 = pneg %p235
        %p506 = pneg %p259
        %p507 = pneg %p256
        %p508 = pneg %p280
        %p509 = pneg %p277
        %p510 = pneg %p301
        %p511 = pneg %p298
        %p512 = pneg %p327
        %p513 = pneg %p324
        %p514 = scmp.lt.s32.totalorder %s28, 1
        %s515 = scalar_select %p514, %s28, 1
        %s516 = smul.addr %s515, 2
        %s517 = smul.addr %s516, 4
        %s518 = scalar_lea.vmem %s13, %s517
        %p519 = scmp.lt.s32.totalorder %s28, 1
        %s520 = scalar_select %p519, %s28, 1
        %s521 = smul.addr %s520, 2
        %s522 = smul.addr %s521, 4
        %s523 = scalar_lea.vmem %s0, %s522
        %p524 = scmp.lt.s32.totalorder %s28, 1
        %s525 = scalar_select %p524, %s28, 1
        %s526 = smul.addr %s525, 2
        %s527 = smul.addr %s526, 4
        %s528 = scalar_lea.vmem %s13, %s527
        %v530 = vld [vmem:[%s523] sm:$0xf]
        %v531 = vld [vmem:[%s523 + $0x4] sm:$0xf]
        %v532 = vunpack.c.l.bf16 %v530
        %v533 = vunpack.c.l.bf16 %v531
        %v534 = vlaneseq
        %v535 = vshrl.u32 %v534, 7
        %v536 = vadd.s32 %v535, 8
        %vm537 = vcmp.lt.s32.totalorder %v535, 0
        %v538 = vsub.s32 0, %v535
        %v539 = vsel %vm537, %v538, %v535
        %v540 = vshrl.u32 %v539, 4
        %v541 = vand.u32 %v539, 15
        %v542 = vsub.s32 0, %v541
        %v543 = vsel %vm537, %v542, %v541
        %vm544 = vcmp.lt.s32.totalorder %v536, 0
        %v545 = vsub.s32 0, %v536
        %v546 = vsel %vm544, %v545, %v536
        %v547 = vshrl.u32 %v546, 4
        %v548 = vand.u32 %v546, 15
        %v549 = vsub.s32 0, %v548
        %v550 = vsel %vm544, %v549, %v548
        %vm551 = vcmp.ne.s32.totalorder %v543, 0
        %vm552 = vcmp.ne.s32.totalorder %v550, 0
        %vm553 = vcmp.lt.s32.totalorder %v543, 0
        %vm554 = vcmp.lt.s32.totalorder %v550, 0
        %vm555 = vmand %vm553, %vm551
        %vm556 = vmand %vm554, %vm552
        %v557 = vadd.s32 %v543, 16
        %v558 = vadd.s32 %v550, 16
        %v559 = vsel %vm555, %v557, %v543
        %v560 = vsel %vm556, %v558, %v550
        %v561 = vrot.slane %v532, 7
        %v562 = vrot.slane %v533, 7
        %vm563 = vcmp.lt.s32.totalorder %v535, 1
        %v564 = vsel %vm563, %v561, %v562
        %v565 = vsel %vm563, %v562, %v561
        %vm566 = vcmp.ge.s32.totalorder %v559, 1
        %vm567 = vcmp.ge.s32.totalorder %v560, 1
        %v568 = vsel %vm566, 1, 0
        %v569 = vsel %vm567, 1, 0
        %vm570 = vcmp.eq.s32.totalorder %v568, 1
        %vm571 = vcmp.eq.s32.totalorder %v569, 1
        %v572 = vsel %vm570, %v565, 0.0
        %v573 = vsel %vm571, %v564, 0.0
        %v574 = vpack.c.bf16 %v573, %v572
        %v575 = vpack.c.bf16 %v533, %v532
        %v576 = vld [vmem:[#allocation2] sm:$0xff]
        %v577 = vld [vmem:[#allocation2 + $0x8] sm:$0xff]
        %v578 = vld [vmem:[#allocation2 + $0x10] sm:$0xff]
        %v579 = vld [vmem:[#allocation2 + $0x18] sm:$0xff]
        %v580 = vld [vmem:[#allocation2 + $0x20] sm:$0xff]
        %v581 = vld [vmem:[#allocation2 + $0x28] sm:$0xff]
        %v582 = vld [vmem:[#allocation2 + $0x30] sm:$0xff]
        %v583 = vld [vmem:[#allocation2 + $0x38] sm:$0xff]
        %v584 = vld [vmem:[#allocation2 + $0x40] sm:$0xff]
        %v585 = vld [vmem:[#allocation2 + $0x48] sm:$0xff]
        %v586 = vld [vmem:[#allocation2 + $0x50] sm:$0xff]
        %v587 = vld [vmem:[#allocation2 + $0x58] sm:$0xff]
        %v588 = vld [vmem:[#allocation2 + $0x60] sm:$0xff]
        %v589 = vld [vmem:[#allocation2 + $0x68] sm:$0xff]
        %v590 = vld [vmem:[#allocation2 + $0x70] sm:$0xff]
        %v591 = vld [vmem:[#allocation2 + $0x78] sm:$0xff]
        %v592 = vld [vmem:[#allocation2 + $0x80] sm:$0xff]
        %v593 = vld [vmem:[#allocation2 + $0x88] sm:$0xff]
        %v594 = vld [vmem:[#allocation2 + $0x90] sm:$0xff]
        %v595 = vld [vmem:[#allocation2 + $0x98] sm:$0xff]
        %v596 = vld [vmem:[#allocation2 + $0xa0] sm:$0xff]
        %v597 = vld [vmem:[#allocation2 + $0xa8] sm:$0xff]
        %v598 = vld [vmem:[#allocation2 + $0xb0] sm:$0xff]
        %v599 = vld [vmem:[#allocation2 + $0xb8] sm:$0xff]
        %v600 = vld [vmem:[#allocation2 + $0xc0] sm:$0xff]
        %v601 = vld [vmem:[#allocation2 + $0xc8] sm:$0xff]
        %v602 = vld [vmem:[#allocation2 + $0xd0] sm:$0xff]
        %v603 = vld [vmem:[#allocation2 + $0xd8] sm:$0xff]
        %v604 = vld [vmem:[#allocation2 + $0xe0] sm:$0xff]
        %v605 = vld [vmem:[#allocation2 + $0xe8] sm:$0xff]
        %v606 = vld [vmem:[#allocation2 + $0xf0] sm:$0xff]
        %v607 = vld [vmem:[#allocation2 + $0xf8] sm:$0xff]
        %v608 = vld [vmem:[%s2] sm:$0x3]
        %v610 = vlaneseq
        %v611 = vshrl.u32 %v610, 7
        %v612 = vsub.s32 0, %v611
        %v613 = vrot.slane %v608, %v612
        %v614 = vlaneseq
        %v615 = vshrl.u32 %v614, 7
        %v616 = vsub.s32 1, %v615
        %v617 = vrot.slane %v608, %v616
        %v652 = vunpack.c.l.b16 %v576
        %v653 = vunpack.c.h.b16 %v576
        %v654 = vunpack.c.l.b16 %v577
        %v655 = vunpack.c.h.b16 %v577
        %v656 = vunpack.c.l.b16 %v578
        %v657 = vunpack.c.h.b16 %v578
        %v658 = vunpack.c.l.b16 %v579
        %v659 = vunpack.c.h.b16 %v579
        %v660 = vunpack.c.l.b16 %v580
        %v661 = vunpack.c.h.b16 %v580
        %v662 = vunpack.c.l.b16 %v581
        %v663 = vunpack.c.h.b16 %v581
        %v664 = vunpack.c.l.b16 %v582
        %v665 = vunpack.c.h.b16 %v582
        %v666 = vunpack.c.l.b16 %v583
        %v667 = vunpack.c.h.b16 %v583
        %v668 = vunpack.c.l.b16 %v584
        %v669 = vunpack.c.h.b16 %v584
        %v670 = vunpack.c.l.b16 %v585
        %v671 = vunpack.c.h.b16 %v585
        %v672 = vunpack.c.l.b16 %v586
        %v673 = vunpack.c.h.b16 %v586
        %v674 = vunpack.c.l.b16 %v587
        %v675 = vunpack.c.h.b16 %v587
        %v676 = vunpack.c.l.b16 %v588
        %v677 = vunpack.c.h.b16 %v588
        %v678 = vunpack.c.l.b16 %v589
        %v679 = vunpack.c.h.b16 %v589
        %v680 = vunpack.c.l.b16 %v590
        %v681 = vunpack.c.h.b16 %v590
        %v682 = vunpack.c.l.b16 %v591
        %v683 = vunpack.c.h.b16 %v591
        %v684 = vunpack.c.l.b16 %v592
        %v685 = vunpack.c.h.b16 %v592
        %v686 = vunpack.c.l.b16 %v593
        %v687 = vunpack.c.h.b16 %v593
        %v688 = vunpack.c.l.b16 %v594
        %v689 = vunpack.c.h.b16 %v594
        %v690 = vunpack.c.l.b16 %v595
        %v691 = vunpack.c.h.b16 %v595
        %v692 = vunpack.c.l.b16 %v596
        %v693 = vunpack.c.h.b16 %v596
        %v694 = vunpack.c.l.b16 %v597
        %v695 = vunpack.c.h.b16 %v597
        %v696 = vunpack.c.l.b16 %v598
        %v697 = vunpack.c.h.b16 %v598
        %v698 = vunpack.c.l.b16 %v599
        %v699 = vunpack.c.h.b16 %v599
        %v700 = vunpack.c.l.b16 %v600
        %v701 = vunpack.c.h.b16 %v600
        %v702 = vunpack.c.l.b16 %v601
        %v703 = vunpack.c.h.b16 %v601
        %v704 = vunpack.c.l.b16 %v602
        %v705 = vunpack.c.h.b16 %v602
        %v706 = vunpack.c.l.b16 %v603
        %v707 = vunpack.c.h.b16 %v603
        %v708 = vunpack.c.l.b16 %v604
        %v709 = vunpack.c.h.b16 %v604
        %v710 = vunpack.c.l.b16 %v605
        %v711 = vunpack.c.h.b16 %v605
        %v712 = vunpack.c.l.b16 %v606
        %v713 = vunpack.c.h.b16 %v606
        %v714 = vunpack.c.l.b16 %v607
        %v715 = vunpack.c.h.b16 %v607
        %v716 = vpack.c.b16 %v654, %v652
        %v717 = vpack.c.b16 %v655, %v653
        %v718 = vpack.c.b16 %v658, %v656
        %v719 = vpack.c.b16 %v659, %v657
        %v720 = vpack.c.b16 %v662, %v660
        %v721 = vpack.c.b16 %v663, %v661
        %v722 = vpack.c.b16 %v666, %v664
        %v723 = vpack.c.b16 %v667, %v665
        %v724 = vpack.c.b16 %v670, %v668
        %v725 = vpack.c.b16 %v671, %v669
        %v726 = vpack.c.b16 %v674, %v672
        %v727 = vpack.c.b16 %v675, %v673
        %v728 = vpack.c.b16 %v678, %v676
        %v729 = vpack.c.b16 %v679, %v677
        %v730 = vpack.c.b16 %v682, %v680
        %v731 = vpack.c.b16 %v683, %v681
        %v732 = vpack.c.b16 %v686, %v684
        %v733 = vpack.c.b16 %v687, %v685
        %v734 = vpack.c.b16 %v690, %v688
        %v735 = vpack.c.b16 %v691, %v689
        %v736 = vpack.c.b16 %v694, %v692
        %v737 = vpack.c.b16 %v695, %v693
        %v738 = vpack.c.b16 %v698, %v696
        %v739 = vpack.c.b16 %v699, %v697
        %v740 = vpack.c.b16 %v702, %v700
        %v741 = vpack.c.b16 %v703, %v701
        %v742 = vpack.c.b16 %v706, %v704
        %v743 = vpack.c.b16 %v707, %v705
        %v744 = vpack.c.b16 %v710, %v708
        %v745 = vpack.c.b16 %v711, %v709
        %v746 = vpack.c.b16 %v714, %v712
        %v747 = vpack.c.b16 %v715, %v713
        %780 = vmatprep.subr.bf16.mxu0 %v717
        %781 = vmatpush1.bf16.msra.mxu0 %v716
        %782 = vmatprep.subr.bf16.mxu0 %v719
        %783 = vmatpush1.bf16.msra.mxu0 %v718
        %784 = vmatprep.subr.bf16.mxu0 %v721
        %785 = vmatpush1.bf16.msra.mxu0 %v720
        %786 = vmatprep.subr.bf16.mxu0 %v723
        %787 = vmatpush1.bf16.msra.mxu0 %v722
        %788 = vmatprep.subr.bf16.mxu0 %v725
        %789 = vmatpush1.bf16.msra.mxu0 %v724
        %790 = vmatprep.subr.bf16.mxu0 %v727
        %791 = vmatpush1.bf16.msra.mxu0 %v726
        %792 = vmatprep.subr.bf16.mxu0 %v729
        %793 = vmatpush1.bf16.msra.mxu0 %v728
        %794 = vmatprep.subr.bf16.mxu0 %v731
        %795 = vmatpush1.bf16.msra.mxu0 %v730
        %796 = vmatprep.subr.bf16.mxu0 %v733
        %797 = vmatpush1.bf16.msra.mxu0 %v732
        %798 = vmatprep.subr.bf16.mxu0 %v735
        %799 = vmatpush1.bf16.msra.mxu0 %v734
        %800 = vmatprep.subr.bf16.mxu0 %v737
        %801 = vmatpush1.bf16.msra.mxu0 %v736
        %802 = vmatprep.subr.bf16.mxu0 %v739
        %803 = vmatpush1.bf16.msra.mxu0 %v738
        %804 = vmatprep.subr.bf16.mxu0 %v741
        %805 = vmatpush1.bf16.msra.mxu0 %v740
        %806 = vmatprep.subr.bf16.mxu0 %v743
        %807 = vmatpush1.bf16.msra.mxu0 %v742
        %808 = vmatprep.subr.bf16.mxu0 %v745
        %809 = vmatpush1.bf16.msra.mxu0 %v744
        %810 = vmatprep.subr.bf16.mxu0 %v747
        %811 = vmatpush1.bf16.msra.mxu0 %v746
        %812 = vmatprep.mubr.bf16.mxu0 %v575
        %813 = vmatmul.mubr.bf16.gmra.mrb[0].mxu0 %v574
        %v814 = vpop.f32.mrb[0].mxu0
        %v815 = vadd.f32 %v613, %v814
        %v816 = vpop.f32.mrb[0].mxu0
        %v817 = vadd.f32 %v617, %v816
        %v818 = vpop.f32.mrb[0].mxu0
        %v819 = vadd.f32 %v613, %v818
        %v820 = vpop.f32.mrb[0].mxu0
        %v821 = vadd.f32 %v617, %v820
        %822 = vdwg.mxu0
        %v823 = vmax.f32 %v815, 0.0
        %v824 = vmax.f32 %v819, 0.0
        %v825 = vrot.slane %v823, 7
        %v826 = vrot.slane %v824, 7
        %v827 = vsel %vm563, %v825, %v826
        %v828 = vsel %vm563, %v826, %v825
        %v829 = vsel %vm570, %v828, 0.0
        %v830 = vsel %vm571, %v827, 0.0
        %v831 = vpack.c.bf16 %v830, %v829
        %v832 = vpack.c.bf16 %v824, %v823
        %v833 = vld [vmem:[#allocation4] sm:$0xf]
        %v834 = vld [vmem:[#allocation4 + $0x4] sm:$0xf]
        %v835 = vld [vmem:[#allocation4 + $0x8] sm:$0xf]
        %v836 = vld [vmem:[#allocation4 + $0xc] sm:$0xf]
        %v837 = vld [vmem:[#allocation4 + $0x10] sm:$0xf]
        %v838 = vld [vmem:[#allocation4 + $0x14] sm:$0xf]
        %v839 = vld [vmem:[#allocation4 + $0x18] sm:$0xf]
        %v840 = vld [vmem:[#allocation4 + $0x1c] sm:$0xf]
        %v841 = vld [vmem:[#allocation4 + $0x20] sm:$0xf]
        %v842 = vld [vmem:[#allocation4 + $0x24] sm:$0xf]
        %v843 = vld [vmem:[#allocation4 + $0x28] sm:$0xf]
        %v844 = vld [vmem:[#allocation4 + $0x2c] sm:$0xf]
        %v845 = vld [vmem:[#allocation4 + $0x30] sm:$0xf]
        %v846 = vld [vmem:[#allocation4 + $0x34] sm:$0xf]
        %v847 = vld [vmem:[#allocation4 + $0x38] sm:$0xf]
        %v848 = vld [vmem:[#allocation4 + $0x3c] sm:$0xf]
        %v849 = vld [vmem:[#allocation4 + $0x40] sm:$0xf]
        %v850 = vld [vmem:[#allocation4 + $0x44] sm:$0xf]
        %v851 = vld [vmem:[#allocation4 + $0x48] sm:$0xf]
        %v852 = vld [vmem:[#allocation4 + $0x4c] sm:$0xf]
        %v853 = vld [vmem:[#allocation4 + $0x50] sm:$0xf]
        %v854 = vld [vmem:[#allocation4 + $0x54] sm:$0xf]
        %v855 = vld [vmem:[#allocation4 + $0x58] sm:$0xf]
        %v856 = vld [vmem:[#allocation4 + $0x5c] sm:$0xf]
        %v857 = vld [vmem:[#allocation4 + $0x60] sm:$0xf]
        %v858 = vld [vmem:[#allocation4 + $0x64] sm:$0xf]
        %v859 = vld [vmem:[#allocation4 + $0x68] sm:$0xf]
        %v860 = vld [vmem:[#allocation4 + $0x6c] sm:$0xf]
        %v861 = vld [vmem:[#allocation4 + $0x70] sm:$0xf]
        %v862 = vld [vmem:[#allocation4 + $0x74] sm:$0xf]
        %v863 = vld [vmem:[#allocation4 + $0x78] sm:$0xf]
        %v864 = vld [vmem:[#allocation4 + $0x7c] sm:$0xf]
        %v865 = vld [vmem:[%s4] sm:$0x1]
        %v867 = vlaneseq
        %v868 = vshrl.u32 %v867, 7
        %v869 = vsub.s32 0, %v868
        %v870 = vrot.slane %v865, %v869
        %v904 = vunpack.c.l.b16 %v833
        %v905 = vunpack.c.l.b16 %v834
        %v906 = vunpack.c.l.b16 %v835
        %v907 = vunpack.c.l.b16 %v836
        %v908 = vunpack.c.l.b16 %v837
        %v909 = vunpack.c.l.b16 %v838
        %v910 = vunpack.c.l.b16 %v839
        %v911 = vunpack.c.l.b16 %v840
        %v912 = vunpack.c.l.b16 %v841
        %v913 = vunpack.c.l.b16 %v842
        %v914 = vunpack.c.l.b16 %v843
        %v915 = vunpack.c.l.b16 %v844
        %v916 = vunpack.c.l.b16 %v845
        %v917 = vunpack.c.l.b16 %v846
        %v918 = vunpack.c.l.b16 %v847
        %v919 = vunpack.c.l.b16 %v848
        %v920 = vunpack.c.l.b16 %v849
        %v921 = vunpack.c.l.b16 %v850
        %v922 = vunpack.c.l.b16 %v851
        %v923 = vunpack.c.l.b16 %v852
        %v924 = vunpack.c.l.b16 %v853
        %v925 = vunpack.c.l.b16 %v854
        %v926 = vunpack.c.l.b16 %v855
        %v927 = vunpack.c.l.b16 %v856
        %v928 = vunpack.c.l.b16 %v857
        %v929 = vunpack.c.l.b16 %v858
        %v930 = vunpack.c.l.b16 %v859
        %v931 = vunpack.c.l.b16 %v860
        %v932 = vunpack.c.l.b16 %v861
        %v933 = vunpack.c.l.b16 %v862
        %v934 = vunpack.c.l.b16 %v863
        %v935 = vunpack.c.l.b16 %v864
        %v936 = vpack.c.b16 %v905, %v904
        %v937 = vpack.c.b16 %v907, %v906
        %v938 = vpack.c.b16 %v909, %v908
        %v939 = vpack.c.b16 %v911, %v910
        %v940 = vpack.c.b16 %v913, %v912
        %v941 = vpack.c.b16 %v915, %v914
        %v942 = vpack.c.b16 %v917, %v916
        %v943 = vpack.c.b16 %v919, %v918
        %v944 = vpack.c.b16 %v921, %v920
        %v945 = vpack.c.b16 %v923, %v922
        %v946 = vpack.c.b16 %v925, %v924
        %v947 = vpack.c.b16 %v927, %v926
        %v948 = vpack.c.b16 %v929, %v928
        %v949 = vpack.c.b16 %v931, %v930
        %v950 = vpack.c.b16 %v933, %v932
        %v951 = vpack.c.b16 %v935, %v934
        %968 = vmatprep.subr.bf16.mxu0 0
        %969 = vmatpush1.bf16.msra.mxu0 %v936
        %970 = vmatprep.subr.bf16.mxu0 0
        %971 = vmatpush1.bf16.msra.mxu0 %v937
        %972 = vmatprep.subr.bf16.mxu0 0
        %973 = vmatpush1.bf16.msra.mxu0 %v938
        %974 = vmatprep.subr.bf16.mxu0 0
        %975 = vmatpush1.bf16.msra.mxu0 %v939
        %976 = vmatprep.subr.bf16.mxu0 0
        %977 = vmatpush1.bf16.msra.mxu0 %v940
        %978 = vmatprep.subr.bf16.mxu0 0
        %979 = vmatpush1.bf16.msra.mxu0 %v941
        %980 = vmatprep.subr.bf16.mxu0 0
        %981 = vmatpush1.bf16.msra.mxu0 %v942
        %982 = vmatprep.subr.bf16.mxu0 0
        %983 = vmatpush1.bf16.msra.mxu0 %v943
        %984 = vmatprep.subr.bf16.mxu0 0
        %985 = vmatpush1.bf16.msra.mxu0 %v944
        %986 = vmatprep.subr.bf16.mxu0 0
        %987 = vmatpush1.bf16.msra.mxu0 %v945
        %988 = vmatprep.subr.bf16.mxu0 0
        %989 = vmatpush1.bf16.msra.mxu0 %v946
        %990 = vmatprep.subr.bf16.mxu0 0
        %991 = vmatpush1.bf16.msra.mxu0 %v947
        %992 = vmatprep.subr.bf16.mxu0 0
        %993 = vmatpush1.bf16.msra.mxu0 %v948
        %994 = vmatprep.subr.bf16.mxu0 0
        %995 = vmatpush1.bf16.msra.mxu0 %v949
        %996 = vmatprep.subr.bf16.mxu0 0
        %997 = vmatpush1.bf16.msra.mxu0 %v950
        %998 = vmatprep.subr.bf16.mxu0 0
        %999 = vmatpush1.bf16.msra.mxu0 %v951
        %1000 = vmatprep.mubr.bf16.mxu0 %v832
        %1001 = vmatmul.mubr.bf16.gmra.mrb[0].mxu0 %v831
        %v1002 = vpop.f32.mrb[0].mxu0
        %v1003 = vadd.f32 %v870, %v1002
        %v1004 = vpop.f32.mrb[0].mxu0
        %v1005 = vpop.f32.mrb[0].mxu0
        %v1006 = vadd.f32 %v870, %v1005
        %v1007 = vpop.f32.mrb[0].mxu0
        %1008 = vdwg.mxu0
        %v1009 = vmax.f32 %v1003, 0.0
        %v1010 = vmax.f32 %v1006, 0.0
        %v1011 = vadd.f32 %v1009, %v817
        %v1012 = vadd.f32 %v1010, %v821
        %v1013 = vmax.f32 %v1011, 0.0
        %v1014 = vmax.f32 %v1012, 0.0
        %v1015 = vrot.slane %v1013, 6
        %v1016 = vrot.slane %v1014, 6
        %vm1017 = vcmp.lt.s32.totalorder %v535, 2
        %v1018 = vsel %vm1017, %v1015, %v1016
        %v1019 = vsel %vm1017, %v1016, %v1015
        %vm1020 = vcmp.ge.s32.totalorder %v559, 2
        %vm1021 = vcmp.ge.s32.totalorder %v560, 2
        %v1022 = vsel %vm1020, 1, 0
        %v1023 = vsel %vm1021, 1, 0
        %vm1024 = vcmp.eq.s32.totalorder %v1022, 1
        %vm1025 = vcmp.eq.s32.totalorder %v1023, 1
        %v1026 = vsel %vm1024, %v1019, 0.0
        %v1027 = vsel %vm1025, %v1018, 0.0
        %v1028 = vpack.c.bf16 %v1027, %v1026
        %v1029 = vpack.c.bf16 %v1014, %v1013
        %v1030 = vld [vmem:[#allocation6] sm:$0xf]
        %v1031 = vld [vmem:[#allocation6 + $0x4] sm:$0xf]
        %v1032 = vld [vmem:[#allocation6 + $0x8] sm:$0xf]
        %v1033 = vld [vmem:[#allocation6 + $0xc] sm:$0xf]
        %v1034 = vld [vmem:[#allocation6 + $0x10] sm:$0xf]
        %v1035 = vld [vmem:[#allocation6 + $0x14] sm:$0xf]
        %v1036 = vld [vmem:[#allocation6 + $0x18] sm:$0xf]
        %v1037 = vld [vmem:[#allocation6 + $0x1c] sm:$0xf]
        %v1038 = vld [vmem:[#allocation6 + $0x20] sm:$0xf]
        %v1039 = vld [vmem:[#allocation6 + $0x24] sm:$0xf]
        %v1040 = vld [vmem:[#allocation6 + $0x28] sm:$0xf]
        %v1041 = vld [vmem:[#allocation6 + $0x2c] sm:$0xf]
        %v1042 = vld [vmem:[#allocation6 + $0x30] sm:$0xf]
        %v1043 = vld [vmem:[#allocation6 + $0x34] sm:$0xf]
        %v1044 = vld [vmem:[#allocation6 + $0x38] sm:$0xf]
        %v1045 = vld [vmem:[#allocation6 + $0x3c] sm:$0xf]
        %v1046 = vld [vmem:[#allocation6 + $0x40] sm:$0xf]
        %v1047 = vld [vmem:[#allocation6 + $0x44] sm:$0xf]
        %v1048 = vld [vmem:[#allocation6 + $0x48] sm:$0xf]
        %v1049 = vld [vmem:[#allocation6 + $0x4c] sm:$0xf]
        %v1050 = vld [vmem:[#allocation6 + $0x50] sm:$0xf]
        %v1051 = vld [vmem:[#allocation6 + $0x54] sm:$0xf]
        %v1052 = vld [vmem:[#allocation6 + $0x58] sm:$0xf]
        %v1053 = vld [vmem:[#allocation6 + $0x5c] sm:$0xf]
        %v1054 = vld [vmem:[#allocation6 + $0x60] sm:$0xf]
        %v1055 = vld [vmem:[#allocation6 + $0x64] sm:$0xf]
        %v1056 = vld [vmem:[#allocation6 + $0x68] sm:$0xf]
        %v1057 = vld [vmem:[#allocation6 + $0x6c] sm:$0xf]
        %v1058 = vld [vmem:[#allocation6 + $0x70] sm:$0xf]
        %v1059 = vld [vmem:[#allocation6 + $0x74] sm:$0xf]
        %v1060 = vld [vmem:[#allocation6 + $0x78] sm:$0xf]
        %v1061 = vld [vmem:[#allocation6 + $0x7c] sm:$0xf]
        %v1062 = vld [vmem:[%s6] sm:$0x1]
        %v1064 = vlaneseq
        %v1065 = vshrl.u32 %v1064, 7
        %v1066 = vsub.s32 0, %v1065
        %v1067 = vrot.slane %v1062, %v1066
        %v1101 = vunpack.c.l.b16 %v1030
        %v1102 = vunpack.c.l.b16 %v1031
        %v1103 = vunpack.c.l.b16 %v1032
        %v1104 = vunpack.c.l.b16 %v1033
        %v1105 = vunpack.c.l.b16 %v1034
        %v1106 = vunpack.c.l.b16 %v1035
        %v1107 = vunpack.c.l.b16 %v1036
        %v1108 = vunpack.c.l.b16 %v1037
        %v1109 = vunpack.c.l.b16 %v1038
        %v1110 = vunpack.c.l.b16 %v1039
        %v1111 = vunpack.c.l.b16 %v1040
        %v1112 = vunpack.c.l.b16 %v1041
        %v1113 = vunpack.c.l.b16 %v1042
        %v1114 = vunpack.c.l.b16 %v1043
        %v1115 = vunpack.c.l.b16 %v1044
        %v1116 = vunpack.c.l.b16 %v1045
        %v1117 = vunpack.c.l.b16 %v1046
        %v1118 = vunpack.c.l.b16 %v1047
        %v1119 = vunpack.c.l.b16 %v1048
        %v1120 = vunpack.c.l.b16 %v1049
        %v1121 = vunpack.c.l.b16 %v1050
        %v1122 = vunpack.c.l.b16 %v1051
        %v1123 = vunpack.c.l.b16 %v1052
        %v1124 = vunpack.c.l.b16 %v1053
        %v1125 = vunpack.c.l.b16 %v1054
        %v1126 = vunpack.c.l.b16 %v1055
        %v1127 = vunpack.c.l.b16 %v1056
        %v1128 = vunpack.c.l.b16 %v1057
        %v1129 = vunpack.c.l.b16 %v1058
        %v1130 = vunpack.c.l.b16 %v1059
        %v1131 = vunpack.c.l.b16 %v1060
        %v1132 = vunpack.c.l.b16 %v1061
        %v1133 = vpack.c.b16 %v1102, %v1101
        %v1134 = vpack.c.b16 %v1104, %v1103
        %v1135 = vpack.c.b16 %v1106, %v1105
        %v1136 = vpack.c.b16 %v1108, %v1107
        %v1137 = vpack.c.b16 %v1110, %v1109
        %v1138 = vpack.c.b16 %v1112, %v1111
        %v1139 = vpack.c.b16 %v1114, %v1113
        %v1140 = vpack.c.b16 %v1116, %v1115
        %v1141 = vpack.c.b16 %v1118, %v1117
        %v1142 = vpack.c.b16 %v1120, %v1119
        %v1143 = vpack.c.b16 %v1122, %v1121
        %v1144 = vpack.c.b16 %v1124, %v1123
        %v1145 = vpack.c.b16 %v1126, %v1125
        %v1146 = vpack.c.b16 %v1128, %v1127
        %v1147 = vpack.c.b16 %v1130, %v1129
        %v1148 = vpack.c.b16 %v1132, %v1131
        %1165 = vmatprep.subr.bf16.mxu0 0
        %1166 = vmatpush1.bf16.msra.mxu0 %v1133
        %1167 = vmatprep.subr.bf16.mxu0 0
        %1168 = vmatpush1.bf16.msra.mxu0 %v1134
        %1169 = vmatprep.subr.bf16.mxu0 0
        %1170 = vmatpush1.bf16.msra.mxu0 %v1135
        %1171 = vmatprep.subr.bf16.mxu0 0
        %1172 = vmatpush1.bf16.msra.mxu0 %v1136
        %1173 = vmatprep.subr.bf16.mxu0 0
        %1174 = vmatpush1.bf16.msra.mxu0 %v1137
        %1175 = vmatprep.subr.bf16.mxu0 0
        %1176 = vmatpush1.bf16.msra.mxu0 %v1138
        %1177 = vmatprep.subr.bf16.mxu0 0
        %1178 = vmatpush1.bf16.msra.mxu0 %v1139
        %1179 = vmatprep.subr.bf16.mxu0 0
        %1180 = vmatpush1.bf16.msra.mxu0 %v1140
        %1181 = vmatprep.subr.bf16.mxu0 0
        %1182 = vmatpush1.bf16.msra.mxu0 %v1141
        %1183 = vmatprep.subr.bf16.mxu0 0
        %1184 = vmatpush1.bf16.msra.mxu0 %v1142
        %1185 = vmatprep.subr.bf16.mxu0 0
        %1186 = vmatpush1.bf16.msra.mxu0 %v1143
        %1187 = vmatprep.subr.bf16.mxu0 0
        %1188 = vmatpush1.bf16.msra.mxu0 %v1144
        %1189 = vmatprep.subr.bf16.mxu0 0
        %1190 = vmatpush1.bf16.msra.mxu0 %v1145
        %1191 = vmatprep.subr.bf16.mxu0 0
        %1192 = vmatpush1.bf16.msra.mxu0 %v1146
        %1193 = vmatprep.subr.bf16.mxu0 0
        %1194 = vmatpush1.bf16.msra.mxu0 %v1147
        %1195 = vmatprep.subr.bf16.mxu0 0
        %1196 = vmatpush1.bf16.msra.mxu0 %v1148
        %1197 = vmatprep.mubr.bf16.mxu0 %v1029
        %1198 = vmatmul.mubr.bf16.gmra.mrb[0].mxu0 %v1028
        %v1199 = vpop.f32.mrb[0].mxu0
        %v1200 = vadd.f32 %v1067, %v1199
        %v1201 = vpop.f32.mrb[0].mxu0
        %v1202 = vpop.f32.mrb[0].mxu0
        %v1203 = vadd.f32 %v1067, %v1202
        %v1204 = vpop.f32.mrb[0].mxu0
        %1205 = vdwg.mxu0
        %v1206 = vmax.f32 %v1200, 0.0
        %v1207 = vmax.f32 %v1203, 0.0
        %v1208 = vrot.slane %v1206, 6
        %v1209 = vrot.slane %v1207, 6
        %v1210 = vsel %vm1017, %v1208, %v1209
        %v1211 = vsel %vm1017, %v1209, %v1208
        %v1212 = vsel %vm1024, %v1211, 0.0
        %v1213 = vsel %vm1025, %v1210, 0.0
        %v1214 = vpack.c.bf16 %v1213, %v1212
        %v1215 = vpack.c.bf16 %v1207, %v1206
        %v1216 = vld [vmem:[#allocation7] sm:$0xf]
        %v1217 = vld [vmem:[#allocation7 + $0x4] sm:$0xf]
        %v1218 = vld [vmem:[#allocation7 + $0x8] sm:$0xf]
        %v1219 = vld [vmem:[#allocation7 + $0xc] sm:$0xf]
        %v1220 = vld [vmem:[#allocation7 + $0x10] sm:$0xf]
        %v1221 = vld [vmem:[#allocation7 + $0x14] sm:$0xf]
        %v1222 = vld [vmem:[#allocation7 + $0x18] sm:$0xf]
        %v1223 = vld [vmem:[#allocation7 + $0x1c] sm:$0xf]
        %v1224 = vld [vmem:[#allocation7 + $0x20] sm:$0xf]
        %v1225 = vld [vmem:[#allocation7 + $0x24] sm:$0xf]
        %v1226 = vld [vmem:[#allocation7 + $0x28] sm:$0xf]
        %v1227 = vld [vmem:[#allocation7 + $0x2c] sm:$0xf]
        %v1228 = vld [vmem:[#allocation7 + $0x30] sm:$0xf]
        %v1229 = vld [vmem:[#allocation7 + $0x34] sm:$0xf]
        %v1230 = vld [vmem:[#allocation7 + $0x38] sm:$0xf]
        %v1231 = vld [vmem:[#allocation7 + $0x3c] sm:$0xf]
        %v1232 = vld [vmem:[#allocation7 + $0x40] sm:$0xf]
        %v1233 = vld [vmem:[#allocation7 + $0x44] sm:$0xf]
        %v1234 = vld [vmem:[#allocation7 + $0x48] sm:$0xf]
        %v1235 = vld [vmem:[#allocation7 + $0x4c] sm:$0xf]
        %v1236 = vld [vmem:[#allocation7 + $0x50] sm:$0xf]
        %v1237 = vld [vmem:[#allocation7 + $0x54] sm:$0xf]
        %v1238 = vld [vmem:[#allocation7 + $0x58] sm:$0xf]
        %v1239 = vld [vmem:[#allocation7 + $0x5c] sm:$0xf]
        %v1240 = vld [vmem:[#allocation7 + $0x60] sm:$0xf]
        %v1241 = vld [vmem:[#allocation7 + $0x64] sm:$0xf]
        %v1242 = vld [vmem:[#allocation7 + $0x68] sm:$0xf]
        %v1243 = vld [vmem:[#allocation7 + $0x6c] sm:$0xf]
        %v1244 = vld [vmem:[#allocation7 + $0x70] sm:$0xf]
        %v1245 = vld [vmem:[#allocation7 + $0x74] sm:$0xf]
        %v1246 = vld [vmem:[#allocation7 + $0x78] sm:$0xf]
        %v1247 = vld [vmem:[#allocation7 + $0x7c] sm:$0xf]
        %v1248 = vld [vmem:[%s8] sm:$0x1]
        %v1250 = vlaneseq
        %v1251 = vshrl.u32 %v1250, 7
        %v1252 = vsub.s32 0, %v1251
        %v1253 = vrot.slane %v1248, %v1252
        %v1287 = vunpack.c.l.b16 %v1216
        %v1288 = vunpack.c.l.b16 %v1217
        %v1289 = vunpack.c.l.b16 %v1218
        %v1290 = vunpack.c.l.b16 %v1219
        %v1291 = vunpack.c.l.b16 %v1220
        %v1292 = vunpack.c.l.b16 %v1221
        %v1293 = vunpack.c.l.b16 %v1222
        %v1294 = vunpack.c.l.b16 %v1223
        %v1295 = vunpack.c.l.b16 %v1224
        %v1296 = vunpack.c.l.b16 %v1225
        %v1297 = vunpack.c.l.b16 %v1226
        %v1298 = vunpack.c.l.b16 %v1227
        %v1299 = vunpack.c.l.b16 %v1228
        %v1300 = vunpack.c.l.b16 %v1229
        %v1301 = vunpack.c.l.b16 %v1230
        %v1302 = vunpack.c.l.b16 %v1231
        %v1303 = vunpack.c.l.b16 %v1232
        %v1304 = vunpack.c.l.b16 %v1233
        %v1305 = vunpack.c.l.b16 %v1234
        %v1306 = vunpack.c.l.b16 %v1235
        %v1307 = vunpack.c.l.b16 %v1236
        %v1308 = vunpack.c.l.b16 %v1237
        %v1309 = vunpack.c.l.b16 %v1238
        %v1310 = vunpack.c.l.b16 %v1239
        %v1311 = vunpack.c.l.b16 %v1240
        %v1312 = vunpack.c.l.b16 %v1241
        %v1313 = vunpack.c.l.b16 %v1242
        %v1314 = vunpack.c.l.b16 %v1243
        %v1315 = vunpack.c.l.b16 %v1244
        %v1316 = vunpack.c.l.b16 %v1245
        %v1317 = vunpack.c.l.b16 %v1246
        %v1318 = vunpack.c.l.b16 %v1247
        %v1319 = vpack.c.b16 %v1288, %v1287
        %v1320 = vpack.c.b16 %v1290, %v1289
        %v1321 = vpack.c.b16 %v1292, %v1291
        %v1322 = vpack.c.b16 %v1294, %v1293
        %v1323 = vpack.c.b16 %v1296, %v1295
        %v1324 = vpack.c.b16 %v1298, %v1297
        %v1325 = vpack.c.b16 %v1300, %v1299
        %v1326 = vpack.c.b16 %v1302, %v1301
        %v1327 = vpack.c.b16 %v1304, %v1303
        %v1328 = vpack.c.b16 %v1306, %v1305
        %v1329 = vpack.c.b16 %v1308, %v1307
        %v1330 = vpack.c.b16 %v1310, %v1309
        %v1331 = vpack.c.b16 %v1312, %v1311
        %v1332 = vpack.c.b16 %v1314, %v1313
        %v1333 = vpack.c.b16 %v1316, %v1315
        %v1334 = vpack.c.b16 %v1318, %v1317
        %1351 = vmatprep.subr.bf16.mxu0 0
        %1352 = vmatpush1.bf16.msra.mxu0 %v1319
        %1353 = vmatprep.subr.bf16.mxu0 0
        %1354 = vmatpush1.bf16.msra.mxu0 %v1320
        %1355 = vmatprep.subr.bf16.mxu0 0
        %1356 = vmatpush1.bf16.msra.mxu0 %v1321
        %1357 = vmatprep.subr.bf16.mxu0 0
        %1358 = vmatpush1.bf16.msra.mxu0 %v1322
        %1359 = vmatprep.subr.bf16.mxu0 0
        %1360 = vmatpush1.bf16.msra.mxu0 %v1323
        %1361 = vmatprep.subr.bf16.mxu0 0
        %1362 = vmatpush1.bf16.msra.mxu0 %v1324
        %1363 = vmatprep.subr.bf16.mxu0 0
        %1364 = vmatpush1.bf16.msra.mxu0 %v1325
        %1365 = vmatprep.subr.bf16.mxu0 0
        %1366 = vmatpush1.bf16.msra.mxu0 %v1326
        %1367 = vmatprep.subr.bf16.mxu0 0
        %1368 = vmatpush1.bf16.msra.mxu0 %v1327
        %1369 = vmatprep.subr.bf16.mxu0 0
        %1370 = vmatpush1.bf16.msra.mxu0 %v1328
        %1371 = vmatprep.subr.bf16.mxu0 0
        %1372 = vmatpush1.bf16.msra.mxu0 %v1329
        %1373 = vmatprep.subr.bf16.mxu0 0
        %1374 = vmatpush1.bf16.msra.mxu0 %v1330
        %1375 = vmatprep.subr.bf16.mxu0 0
        %1376 = vmatpush1.bf16.msra.mxu0 %v1331
        %1377 = vmatprep.subr.bf16.mxu0 0
        %1378 = vmatpush1.bf16.msra.mxu0 %v1332
        %1379 = vmatprep.subr.bf16.mxu0 0
        %1380 = vmatpush1.bf16.msra.mxu0 %v1333
        %1381 = vmatprep.subr.bf16.mxu0 0
        %1382 = vmatpush1.bf16.msra.mxu0 %v1334
        %1383 = vmatprep.mubr.bf16.mxu0 %v1215
        %1384 = vmatmul.mubr.bf16.gmra.mrb[0].mxu0 %v1214
        %v1385 = vpop.f32.mrb[0].mxu0
        %v1386 = vadd.f32 %v1253, %v1385
        %v1387 = vpop.f32.mrb[0].mxu0
        %v1388 = vpop.f32.mrb[0].mxu0
        %v1389 = vadd.f32 %v1253, %v1388
        %v1390 = vpop.f32.mrb[0].mxu0
        %1391 = vdwg.mxu0
        %v1392 = vmax.f32 %v1386, 0.0
        %v1393 = vmax.f32 %v1389, 0.0
        %v1394 = vadd.f32 %v1392, %v1013
        %v1395 = vadd.f32 %v1393, %v1014
        %v1396 = vmax.f32 %v1394, 0.0
        %v1397 = vmax.f32 %v1395, 0.0
        %v1398 = vrot.slane %v1396, 4
        %v1399 = vrot.slane %v1397, 4
        %vm1400 = vcmp.lt.s32.totalorder %v535, 4
        %v1401 = vsel %vm1400, %v1398, %v1399
        %v1402 = vsel %vm1400, %v1399, %v1398
        %vm1403 = vcmp.ge.s32.totalorder %v559, 4
        %vm1404 = vcmp.ge.s32.totalorder %v560, 4
        %v1405 = vsel %vm1403, 1, 0
        %v1406 = vsel %vm1404, 1, 0
        %vm1407 = vcmp.eq.s32.totalorder %v1405, 1
        %vm1408 = vcmp.eq.s32.totalorder %v1406, 1
        %v1409 = vsel %vm1407, %v1402, 0.0
        %v1410 = vsel %vm1408, %v1401, 0.0
        %v1411 = vpack.c.bf16 %v1410, %v1409
        %v1412 = vpack.c.bf16 %v1397, %v1396
        %v1413 = vld [vmem:[#allocation9] sm:$0xff]
        %v1414 = vld [vmem:[#allocation9 + $0x8] sm:$0xff]
        %v1415 = vld [vmem:[#allocation9 + $0x10] sm:$0xff]
        %v1416 = vld [vmem:[#allocation9 + $0x18] sm:$0xff]
        %v1417 = vld [vmem:[#allocation9 + $0x20] sm:$0xff]
        %v1418 = vld [vmem:[#allocation9 + $0x28] sm:$0xff]
        %v1419 = vld [vmem:[#allocation9 + $0x30] sm:$0xff]
        %v1420 = vld [vmem:[#allocation9 + $0x38] sm:$0xff]
        %v1421 = vld [vmem:[#allocation9 + $0x40] sm:$0xff]
        %v1422 = vld [vmem:[#allocation9 + $0x48] sm:$0xff]
        %v1423 = vld [vmem:[#allocation9 + $0x50] sm:$0xff]
        %v1424 = vld [vmem:[#allocation9 + $0x58] sm:$0xff]
        %v1425 = vld [vmem:[#allocation9 + $0x60] sm:$0xff]
        %v1426 = vld [vmem:[#allocation9 + $0x68] sm:$0xff]
        %v1427 = vld [vmem:[#allocation9 + $0x70] sm:$0xff]
        %v1428 = vld [vmem:[#allocation9 + $0x78] sm:$0xff]
        %v1429 = vld [vmem:[#allocation9 + $0x80] sm:$0xff]
        %v1430 = vld [vmem:[#allocation9 + $0x88] sm:$0xff]
        %v1431 = vld [vmem:[#allocation9 + $0x90] sm:$0xff]
        %v1432 = vld [vmem:[#allocation9 + $0x98] sm:$0xff]
        %v1433 = vld [vmem:[#allocation9 + $0xa0] sm:$0xff]
        %v1434 = vld [vmem:[#allocation9 + $0xa8] sm:$0xff]
        %v1435 = vld [vmem:[#allocation9 + $0xb0] sm:$0xff]
        %v1436 = vld [vmem:[#allocation9 + $0xb8] sm:$0xff]
        %v1437 = vld [vmem:[#allocation9 + $0xc0] sm:$0xff]
        %v1438 = vld [vmem:[#allocation9 + $0xc8] sm:$0xff]
        %v1439 = vld [vmem:[#allocation9 + $0xd0] sm:$0xff]
        %v1440 = vld [vmem:[#allocation9 + $0xd8] sm:$0xff]
        %v1441 = vld [vmem:[#allocation9 + $0xe0] sm:$0xff]
        %v1442 = vld [vmem:[#allocation9 + $0xe8] sm:$0xff]
        %v1443 = vld [vmem:[#allocation9 + $0xf0] sm:$0xff]
        %v1444 = vld [vmem:[#allocation9 + $0xf8] sm:$0xff]
        %v1445 = vld [vmem:[%s10] sm:$0x3]
        %v1447 = vlaneseq
        %v1448 = vshrl.u32 %v1447, 7
        %v1449 = vsub.s32 0, %v1448
        %v1450 = vrot.slane %v1445, %v1449
        %v1451 = vlaneseq
        %v1452 = vshrl.u32 %v1451, 7
        %v1453 = vsub.s32 1, %v1452
        %v1454 = vrot.slane %v1445, %v1453
        %v1489 = vunpack.c.l.b16 %v1413
        %v1490 = vunpack.c.h.b16 %v1413
        %v1491 = vunpack.c.l.b16 %v1414
        %v1492 = vunpack.c.h.b16 %v1414
        %v1493 = vunpack.c.l.b16 %v1415
        %v1494 = vunpack.c.h.b16 %v1415
        %v1495 = vunpack.c.l.b16 %v1416
        %v1496 = vunpack.c.h.b16 %v1416
        %v1497 = vunpack.c.l.b16 %v1417
        %v1498 = vunpack.c.h.b16 %v1417
        %v1499 = vunpack.c.l.b16 %v1418
        %v1500 = vunpack.c.h.b16 %v1418
        %v1501 = vunpack.c.l.b16 %v1419
        %v1502 = vunpack.c.h.b16 %v1419
        %v1503 = vunpack.c.l.b16 %v1420
        %v1504 = vunpack.c.h.b16 %v1420
        %v1505 = vunpack.c.l.b16 %v1421
        %v1506 = vunpack.c.h.b16 %v1421
        %v1507 = vunpack.c.l.b16 %v1422
        %v1508 = vunpack.c.h.b16 %v1422
        %v1509 = vunpack.c.l.b16 %v1423
        %v1510 = vunpack.c.h.b16 %v1423
        %v1511 = vunpack.c.l.b16 %v1424
        %v1512 = vunpack.c.h.b16 %v1424
        %v1513 = vunpack.c.l.b16 %v1425
        %v1514 = vunpack.c.h.b16 %v1425
        %v1515 = vunpack.c.l.b16 %v1426
        %v1516 = vunpack.c.h.b16 %v1426
        %v1517 = vunpack.c.l.b16 %v1427
        %v1518 = vunpack.c.h.b16 %v1427
        %v1519 = vunpack.c.l.b16 %v1428
        %v1520 = vunpack.c.h.b16 %v1428
        %v1521 = vunpack.c.l.b16 %v1429
        %v1522 = vunpack.c.h.b16 %v1429
        %v1523 = vunpack.c.l.b16 %v1430
        %v1524 = vunpack.c.h.b16 %v1430
        %v1525 = vunpack.c.l.b16 %v1431
        %v1526 = vunpack.c.h.b16 %v1431
        %v1527 = vunpack.c.l.b16 %v1432
        %v1528 = vunpack.c.h.b16 %v1432
        %v1529 = vunpack.c.l.b16 %v1433
        %v1530 = vunpack.c.h.b16 %v1433
        %v1531 = vunpack.c.l.b16 %v1434
        %v1532 = vunpack.c.h.b16 %v1434
        %v1533 = vunpack.c.l.b16 %v1435
        %v1534 = vunpack.c.h.b16 %v1435
        %v1535 = vunpack.c.l.b16 %v1436
        %v1536 = vunpack.c.h.b16 %v1436
        %v1537 = vunpack.c.l.b16 %v1437
        %v1538 = vunpack.c.h.b16 %v1437
        %v1539 = vunpack.c.l.b16 %v1438
        %v1540 = vunpack.c.h.b16 %v1438
        %v1541 = vunpack.c.l.b16 %v1439
        %v1542 = vunpack.c.h.b16 %v1439
        %v1543 = vunpack.c.l.b16 %v1440
        %v1544 = vunpack.c.h.b16 %v1440
        %v1545 = vunpack.c.l.b16 %v1441
        %v1546 = vunpack.c.h.b16 %v1441
        %v1547 = vunpack.c.l.b16 %v1442
        %v1548 = vunpack.c.h.b16 %v1442
        %v1549 = vunpack.c.l.b16 %v1443
        %v1550 = vunpack.c.h.b16 %v1443
        %v1551 = vunpack.c.l.b16 %v1444
        %v1552 = vunpack.c.h.b16 %v1444
        %v1553 = vpack.c.b16 %v1491, %v1489
        %v1554 = vpack.c.b16 %v1492, %v1490
        %v1555 = vpack.c.b16 %v1495, %v1493
        %v1556 = vpack.c.b16 %v1496, %v1494
        %v1557 = vpack.c.b16 %v1499, %v1497
        %v1558 = vpack.c.b16 %v1500, %v1498
        %v1559 = vpack.c.b16 %v1503, %v1501
        %v1560 = vpack.c.b16 %v1504, %v1502
        %v1561 = vpack.c.b16 %v1507, %v1505
        %v1562 = vpack.c.b16 %v1508, %v1506
        %v1563 = vpack.c.b16 %v1511, %v1509
        %v1564 = vpack.c.b16 %v1512, %v1510
        %v1565 = vpack.c.b16 %v1515, %v1513
        %v1566 = vpack.c.b16 %v1516, %v1514
        %v1567 = vpack.c.b16 %v1519, %v1517
        %v1568 = vpack.c.b16 %v1520, %v1518
        %v1569 = vpack.c.b16 %v1523, %v1521
        %v1570 = vpack.c.b16 %v1524, %v1522
        %v1571 = vpack.c.b16 %v1527, %v1525
        %v1572 = vpack.c.b16 %v1528, %v1526
        %v1573 = vpack.c.b16 %v1531, %v1529
        %v1574 = vpack.c.b16 %v1532, %v1530
        %v1575 = vpack.c.b16 %v1535, %v1533
        %v1576 = vpack.c.b16 %v1536, %v1534
        %v1577 = vpack.c.b16 %v1539, %v1537
        %v1578 = vpack.c.b16 %v1540, %v1538
        %v1579 = vpack.c.b16 %v1543, %v1541
        %v1580 = vpack.c.b16 %v1544, %v1542
        %v1581 = vpack.c.b16 %v1547, %v1545
        %v1582 = vpack.c.b16 %v1548, %v1546
        %v1583 = vpack.c.b16 %v1551, %v1549
        %v1584 = vpack.c.b16 %v1552, %v1550
        %1617 = vmatprep.subr.bf16.mxu0 %v1554
        %1618 = vmatpush1.bf16.msra.mxu0 %v1553
        %1619 = vmatprep.subr.bf16.mxu0 %v1556
        %1620 = vmatpush1.bf16.msra.mxu0 %v1555
        %1621 = vmatprep.subr.bf16.mxu0 %v1558
        %1622 = vmatpush1.bf16.msra.mxu0 %v1557
        %1623 = vmatprep.subr.bf16.mxu0 %v1560
        %1624 = vmatpush1.bf16.msra.mxu0 %v1559
        %1625 = vmatprep.subr.bf16.mxu0 %v1562
        %1626 = vmatpush1.bf16.msra.mxu0 %v1561
        %1627 = vmatprep.subr.bf16.mxu0 %v1564
        %1628 = vmatpush1.bf16.msra.mxu0 %v1563
        %1629 = vmatprep.subr.bf16.mxu0 %v1566
        %1630 = vmatpush1.bf16.msra.mxu0 %v1565
        %1631 = vmatprep.subr.bf16.mxu0 %v1568
        %1632 = vmatpush1.bf16.msra.mxu0 %v1567
        %1633 = vmatprep.subr.bf16.mxu0 %v1570
        %1634 = vmatpush1.bf16.msra.mxu0 %v1569
        %1635 = vmatprep.subr.bf16.mxu0 %v1572
        %1636 = vmatpush1.bf16.msra.mxu0 %v1571
        %1637 = vmatprep.subr.bf16.mxu0 %v1574
        %1638 = vmatpush1.bf16.msra.mxu0 %v1573
        %1639 = vmatprep.subr.bf16.mxu0 %v1576
        %1640 = vmatpush1.bf16.msra.mxu0 %v1575
        %1641 = vmatprep.subr.bf16.mxu0 %v1578
        %1642 = vmatpush1.bf16.msra.mxu0 %v1577
        %1643 = vmatprep.subr.bf16.mxu0 %v1580
        %1644 = vmatpush1.bf16.msra.mxu0 %v1579
        %1645 = vmatprep.subr.bf16.mxu0 %v1582
        %1646 = vmatpush1.bf16.msra.mxu0 %v1581
        %1647 = vmatprep.subr.bf16.mxu0 %v1584
        %1648 = vmatpush1.bf16.msra.mxu0 %v1583
        %1649 = vmatprep.mubr.bf16.mxu0 %v1412
        %1650 = vmatmul.mubr.bf16.gmra.mrb[0].mxu0 %v1411
        %v1651 = vpop.f32.mrb[0].mxu0
        %v1652 = vadd.f32 %v1450, %v1651
        %v1653 = vpop.f32.mrb[0].mxu0
        %v1654 = vadd.f32 %v1454, %v1653
        %v1655 = vpop.f32.mrb[0].mxu0
        %v1656 = vadd.f32 %v1450, %v1655
        %v1657 = vpop.f32.mrb[0].mxu0
        %v1658 = vadd.f32 %v1454, %v1657
        %1659 = vdwg.mxu0
        %v1660 = vmax.f32 %v1652, 0.0
        %v1661 = vmax.f32 %v1656, 0.0
        %v1662 = vrot.slane %v1660, 4
        %v1663 = vrot.slane %v1661, 4
        %v1664 = vsel %vm1400, %v1662, %v1663
        %v1665 = vsel %vm1400, %v1663, %v1662
        %v1666 = vsel %vm1407, %v1665, 0.0
        %v1667 = vsel %vm1408, %v1664, 0.0
        %v1668 = vpack.c.bf16 %v1667, %v1666
        %v1669 = vpack.c.bf16 %v1661, %v1660
        %v1670 = vld [vmem:[#allocation10] sm:$0xf]
        %v1671 = vld [vmem:[#allocation10 + $0x4] sm:$0xf]
        %v1672 = vld [vmem:[#allocation10 + $0x8] sm:$0xf]
        %v1673 = vld [vmem:[#allocation10 + $0xc] sm:$0xf]
        %v1674 = vld [vmem:[#allocation10 + $0x10] sm:$0xf]
        %v1675 = vld [vmem:[#allocation10 + $0x14] sm:$0xf]
        %v1676 = vld [vmem:[#allocation10 + $0x18] sm:$0xf]
        %v1677 = vld [vmem:[#allocation10 + $0x1c] sm:$0xf]
        %v1678 = vld [vmem:[#allocation10 + $0x20] sm:$0xf]
        %v1679 = vld [vmem:[#allocation10 + $0x24] sm:$0xf]
        %v1680 = vld [vmem:[#allocation10 + $0x28] sm:$0xf]
        %v1681 = vld [vmem:[#allocation10 + $0x2c] sm:$0xf]
        %v1682 = vld [vmem:[#allocation10 + $0x30] sm:$0xf]
        %v1683 = vld [vmem:[#allocation10 + $0x34] sm:$0xf]
        %v1684 = vld [vmem:[#allocation10 + $0x38] sm:$0xf]
        %v1685 = vld [vmem:[#allocation10 + $0x3c] sm:$0xf]
        %v1686 = vld [vmem:[#allocation10 + $0x40] sm:$0xf]
        %v1687 = vld [vmem:[#allocation10 + $0x44] sm:$0xf]
        %v1688 = vld [vmem:[#allocation10 + $0x48] sm:$0xf]
        %v1689 = vld [vmem:[#allocation10 + $0x4c] sm:$0xf]
        %v1690 = vld [vmem:[#allocation10 + $0x50] sm:$0xf]
        %v1691 = vld [vmem:[#allocation10 + $0x54] sm:$0xf]
        %v1692 = vld [vmem:[#allocation10 + $0x58] sm:$0xf]
        %v1693 = vld [vmem:[#allocation10 + $0x5c] sm:$0xf]
        %v1694 = vld [vmem:[#allocation10 + $0x60] sm:$0xf]
        %v1695 = vld [vmem:[#allocation10 + $0x64] sm:$0xf]
        %v1696 = vld [vmem:[#allocation10 + $0x68] sm:$0xf]
        %v1697 = vld [vmem:[#allocation10 + $0x6c] sm:$0xf]
        %v1698 = vld [vmem:[#allocation10 + $0x70] sm:$0xf]
        %v1699 = vld [vmem:[#allocation10 + $0x74] sm:$0xf]
        %v1700 = vld [vmem:[#allocation10 + $0x78] sm:$0xf]
        %v1701 = vld [vmem:[#allocation10 + $0x7c] sm:$0xf]
        %v1702 = vld [vmem:[%s12] sm:$0x1]
        %v1704 = vlaneseq
        %v1705 = vshrl.u32 %v1704, 7
        %v1706 = vsub.s32 0, %v1705
        %v1707 = vrot.slane %v1702, %v1706
        %v1741 = vunpack.c.l.b16 %v1670
        %v1742 = vunpack.c.l.b16 %v1671
        %v1743 = vunpack.c.l.b16 %v1672
        %v1744 = vunpack.c.l.b16 %v1673
        %v1745 = vunpack.c.l.b16 %v1674
        %v1746 = vunpack.c.l.b16 %v1675
        %v1747 = vunpack.c.l.b16 %v1676
        %v1748 = vunpack.c.l.b16 %v1677
        %v1749 = vunpack.c.l.b16 %v1678
        %v1750 = vunpack.c.l.b16 %v1679
        %v1751 = vunpack.c.l.b16 %v1680
        %v1752 = vunpack.c.l.b16 %v1681
        %v1753 = vunpack.c.l.b16 %v1682
        %v1754 = vunpack.c.l.b16 %v1683
        %v1755 = vunpack.c.l.b16 %v1684
        %v1756 = vunpack.c.l.b16 %v1685
        %v1757 = vunpack.c.l.b16 %v1686
        %v1758 = vunpack.c.l.b16 %v1687
        %v1759 = vunpack.c.l.b16 %v1688
        %v1760 = vunpack.c.l.b16 %v1689
        %v1761 = vunpack.c.l.b16 %v1690
        %v1762 = vunpack.c.l.b16 %v1691
        %v1763 = vunpack.c.l.b16 %v1692
        %v1764 = vunpack.c.l.b16 %v1693
        %v1765 = vunpack.c.l.b16 %v1694
        %v1766 = vunpack.c.l.b16 %v1695
        %v1767 = vunpack.c.l.b16 %v1696
        %v1768 = vunpack.c.l.b16 %v1697
        %v1769 = vunpack.c.l.b16 %v1698
        %v1770 = vunpack.c.l.b16 %v1699
        %v1771 = vunpack.c.l.b16 %v1700
        %v1772 = vunpack.c.l.b16 %v1701
        %v1773 = vpack.c.b16 %v1742, %v1741
        %v1774 = vpack.c.b16 %v1744, %v1743
        %v1775 = vpack.c.b16 %v1746, %v1745
        %v1776 = vpack.c.b16 %v1748, %v1747
        %v1777 = vpack.c.b16 %v1750, %v1749
        %v1778 = vpack.c.b16 %v1752, %v1751
        %v1779 = vpack.c.b16 %v1754, %v1753
        %v1780 = vpack.c.b16 %v1756, %v1755
        %v1781 = vpack.c.b16 %v1758, %v1757
        %v1782 = vpack.c.b16 %v1760, %v1759
        %v1783 = vpack.c.b16 %v1762, %v1761
        %v1784 = vpack.c.b16 %v1764, %v1763
        %v1785 = vpack.c.b16 %v1766, %v1765
        %v1786 = vpack.c.b16 %v1768, %v1767
        %v1787 = vpack.c.b16 %v1770, %v1769
        %v1788 = vpack.c.b16 %v1772, %v1771
        %1805 = vmatprep.subr.bf16.mxu0 0
        %1806 = vmatpush1.bf16.msra.mxu0 %v1773
        %1807 = vmatprep.subr.bf16.mxu0 0
        %1808 = vmatpush1.bf16.msra.mxu0 %v1774
        %1809 = vmatprep.subr.bf16.mxu0 0
        %1810 = vmatpush1.bf16.msra.mxu0 %v1775
        %1811 = vmatprep.subr.bf16.mxu0 0
        %1812 = vmatpush1.bf16.msra.mxu0 %v1776
        %1813 = vmatprep.subr.bf16.mxu0 0
        %1814 = vmatpush1.bf16.msra.mxu0 %v1777
        %1815 = vmatprep.subr.bf16.mxu0 0
        %1816 = vmatpush1.bf16.msra.mxu0 %v1778
        %1817 = vmatprep.subr.bf16.mxu0 0
        %1818 = vmatpush1.bf16.msra.mxu0 %v1779
        %1819 = vmatprep.subr.bf16.mxu0 0
        %1820 = vmatpush1.bf16.msra.mxu0 %v1780
        %1821 = vmatprep.subr.bf16.mxu0 0
        %1822 = vmatpush1.bf16.msra.mxu0 %v1781
        %1823 = vmatprep.subr.bf16.mxu0 0
        %1824 = vmatpush1.bf16.msra.mxu0 %v1782
        %1825 = vmatprep.subr.bf16.mxu0 0
        %1826 = vmatpush1.bf16.msra.mxu0 %v1783
        %1827 = vmatprep.subr.bf16.mxu0 0
        %1828 = vmatpush1.bf16.msra.mxu0 %v1784
        %1829 = vmatprep.subr.bf16.mxu0 0
        %1830 = vmatpush1.bf16.msra.mxu0 %v1785
        %1831 = vmatprep.subr.bf16.mxu0 0
        %1832 = vmatpush1.bf16.msra.mxu0 %v1786
        %1833 = vmatprep.subr.bf16.mxu0 0
        %1834 = vmatpush1.bf16.msra.mxu0 %v1787
        %1835 = vmatprep.subr.bf16.mxu0 0
        %1836 = vmatpush1.bf16.msra.mxu0 %v1788
        %1837 = vmatprep.mubr.bf16.mxu0 %v1669
        %1838 = vmatmul.mubr.bf16.gmra.mrb[0].mxu0 %v1668
        %v1839 = vpop.f32.mrb[0].mxu0
        %v1840 = vadd.f32 %v1707, %v1839
        %v1841 = vpop.f32.mrb[0].mxu0
        %v1842 = vpop.f32.mrb[0].mxu0
        %v1843 = vadd.f32 %v1707, %v1842
        %v1844 = vpop.f32.mrb[0].mxu0
        %1845 = vdwg.mxu0
        %v1846 = vmax.f32 %v1840, 0.0
        %v1847 = vmax.f32 %v1843, 0.0
        %v1848 = vadd.f32 %v1846, %v1654
        %v1849 = vadd.f32 %v1847, %v1658
        %v1850 = vmax.f32 %v1848, 0.0
        %v1851 = vmax.f32 %v1849, 0.0
        %v1852 = vpack.c.bf16 %v1851, %v1850
        %v1854 = vunpack.c.l.b16 %v1852
        %v1855 = vunpack.c.h.b16 %v1852
        %v1856 = vpack.c.b16 %v1854, %v1854
        %v1857 = vpack.c.b16 %v1855, %v1855
        %1860 = vst [vmem:[%s528] sm:$0xf] %v1856
        %1861 = vst [vmem:[%s528 + $0x4] sm:$0xf] %v1857
        %p1862 = scmp.lt.s32.totalorder %s28, 1
        %s1863 = scalar_select %p1862, %s28, 1
        %s1864 = smul.addr %s1863, 2
        %s1865 = smul.addr %s1864, 4
        %s1866 = scalar_lea.vmem %s13, %s1865
        // Predicated region
        $region97: #{temporal_conv_net.1} parent=71 // pred_check
          %p1867 = pneg %p324
        $region98: #{temporal_conv_net.1} parent=71 // pred_check_branch
          %1869 = sbr.rel (%p1867) target = $region100
        $region99: #{temporal_conv_net.1} parent=71 // pred_region
          _
        $region100: #{temporal_conv_net.1} parent=71 // pred_fallthru
          _
      $region72: #{temporal_conv_net.1} parent=5 // pred_fallthru
        _
      %p1870 = scmp.le.s32.totalorder 2, %s23
      // Predicated region
      $region101: #{temporal_conv_net.1} parent=5 // pred_check
        %p1871 = pneg %p1870
      $region102: #{temporal_conv_net.1} parent=5 // pred_check_branch
        %1873 = sbr.rel (%p1871) target = $region104
      $region103: #{temporal_conv_net.1} parent=5 // pred_region
        %s1874 = ssub.s32 %s23, 2
        // Predicated region
        $region105: #{temporal_conv_net.1} parent=103 // pred_check
          %p1875 = pneg %p330
        $region106: #{temporal_conv_net.1} parent=103 // pred_check_branch
          %1877 = sbr.rel (%p1875) target = $region108
        $region107: #{temporal_conv_net.1} parent=103 // pred_region
          %p1878 = scmp.lt.s32.totalorder %s29, 1
          %s1879 = scalar_select %p1878, %s29, 1
          %s1880 = smul.addr %s1879, 2
          %s1881 = smul.addr %s1880, 4
          %s1882 = scalar_lea.vmem %s13, %s1881
        $region108: #{temporal_conv_net.1} parent=103 // pred_fallthru
          _
      $region104: #{temporal_conv_net.1} parent=5 // pred_fallthru
        _
    $region6: #{temporal_conv_net.1} parent=1 // loop_footer
      %s27 = sadd.s32 1, %s23
    $region7: #{temporal_conv_net.1} parent=1 // loop_footer_branch
      %22 = sbr.rel target = $region3
    $region8: #{temporal_conv_net.1} parent=1 // loop_exit
      _
    %1883 = vsyncpa [#allocation3], 1
    %s1884 = scalar_lea.sflag [#allocation3], 1
    %1885 = vsyncpa %s1884, 1
    %1886 = vsyncpa [#allocation5], 1
    %1887 = vsyncpa [#allocation8], 1
    %1888 = vsyncpa [#allocation11], 1

</llo_original>
